<compile_context>
chip_gen: v7x
topology: tpu7x:2x2x1
jax: 0.10.0
libtpu: 0.0.40
codegen_flags: <defaults>
</compile_context>

<pallas_src>
import functools

import jax
import jax.numpy as jnp
from jax import lax
import numpy as np
from jax.experimental import pallas as pl
from jax.experimental.pallas import tpu as pltpu


def _shift_lanes(v, d):
    """out[..., p] = v[..., p + d]; zero-filled where p + d is out of range."""
    if d == 0:
        return v
    rows, n = v.shape
    z = jnp.zeros((rows, abs(d)), v.dtype)
    if d > 0:
        return jnp.concatenate([v[:, d:], z], axis=1)
    return jnp.concatenate([z, v[:, :n + d]], axis=1)


def _cbam_kernel(x_ref, w1_ref, b1_ref, w2_ref, b2_ref, wmat_ref, bn_ref,
                 o_ref, *, H, W):
    HW = H * W
    C = x_ref.shape[1]
    x = x_ref[0]                                    # (C, HW) f32, lane-dense

    # ---------------- ChannelGate (MXU) --------------------------------------
    # avg-over-HW as an MXU dot; max-over-HW is unavoidable on the XLU.
    ones_hw = jnp.ones((HW, 1), jnp.float32)
    avg = jnp.dot(x, ones_hw, preferred_element_type=jnp.float32) * (1.0 / HW)  # (C,1)
    mx = jnp.max(x, axis=1, keepdims=True)                                      # (C,1)

    # Shared MLP on the MXU in the natural (C, 2) column orientation; summing
    # the two result columns gives mlp(avg) + mlp(max) without any transposes.
    pooled = jnp.concatenate([avg, mx], axis=1)                                 # (C,2)
    h = jnp.dot(w1_ref[...], pooled, preferred_element_type=jnp.float32)        # (hid,2)
    h = jnp.maximum(h + b1_ref[...], 0.0)                                       # ReLU
    att2 = (jnp.dot(w2_ref[...], h, preferred_element_type=jnp.float32)
            + b2_ref[...])                                                      # (C,2)
    att = jnp.sum(att2, axis=1, keepdims=True)      # channel_att_sum, (C,1)
    scale = jax.nn.sigmoid(att)
    xg = x * scale                                  # per-channel scaling

    # ---------------- SpatialGate --------------------------------------------
    # ChannelPool: max-over-C stays on the XLU; mean-over-C (the big
    # cross-sublane reduction) becomes an MXU dot ones(1,C) @ xg.
    cmax = jnp.max(xg, axis=0, keepdims=True)                                   # (1,HW)
    ones_c = jnp.ones((1, C), jnp.float32)
    cmean = (jnp.dot(ones_c, xg, preferred_element_type=jnp.float32)
             * (1.0 / C))                                                       # (1,HW)
    cpool = jnp.concatenate([cmax, cmean], axis=0)                              # (2,HW)

    # 7 column (lane-axis) shifts shared by the max and mean maps.  The column
    # mask realizes the horizontal zero pad (a plain lane shift would leak
    # across row boundaries in flattened space).
    col = lax.broadcasted_iota(jnp.int32, (1, HW), 1) % W
    shifted = []
    for dj in range(-3, 4):
        cmask = jnp.logical_and(col + dj >= 0, col + dj < W).astype(jnp.float32)
        shifted.append(_shift_lanes(cpool, dj) * cmask)
    s_stack = jnp.concatenate(shifted, axis=0)                                  # (14,HW)

    # Conv2d(2 -> 1, k=7, pad=3, bias=False) collapsed to one small MXU matmul:
    # wmat[ki, 2*kj + m] is the tap weight for row offset ki-3, column offset
    # kj-3 of ChannelPool map m (0 = max, 1 = mean), matching s_stack's row
    # layout.  Row ki of the result is the per-row-offset partial sum; the row
    # shift by (ki-3)*W lanes supplies the vertical zero pad.
    t_rows = jnp.dot(wmat_ref[...], s_stack,
                     preferred_element_type=jnp.float32)                        # (7,HW)
    acc = jnp.zeros((1, HW), jnp.float32)
    for di in range(-3, 4):
        acc = acc + _shift_lanes(t_rows[di + 3:di + 4, :], di * W)

    # BatchNorm2d (eval mode, folded) + sigmoid, then spatial scaling.
    y = acc * bn_ref[0] + bn_ref[1]                 # (1, HW)
    smap = jax.nn.sigmoid(y)
    o_ref[0] = (xg * smap).astype(o_ref.dtype)      # broadcast over C sublanes


# ---------------- wrapper ----------------------------------------------------
def cbam_forward(x, params):
    N, C, H, W = x.shape
    HW = H * W
    hid = params["w1"].shape[0]

    x3 = x.reshape(N, C, HW).astype(jnp.float32)
    w1 = params["w1"].astype(jnp.float32)                        # (hid, C)
    b1 = params["b1"].reshape(hid, 1).astype(jnp.float32)
    b2 = params["b2"].reshape(C, 1).astype(jnp.float32)
    w2 = params["w2"].astype(jnp.float32)                        # (C, hid)

    # (7, 14) conv weight matrix: column 2*kj + m holds tap (ki, kj) of
    # ChannelPool map m (0 = max, 1 = mean) -> matches torch.cat((max, mean)).
    cw = params["conv_w"].astype(jnp.float32)                    # (1, 2, 7, 7)
    wmat = jnp.stack([cw[0, 0], cw[0, 1]], axis=-1).reshape(7, 14)

    eps = 1e-5
    bn_scale = params["bn_gamma"] / jnp.sqrt(params["bn_var"] + eps)
    bn_shift = params["bn_beta"] - params["bn_mean"] * bn_scale
    bn = jnp.stack([bn_scale[0], bn_shift[0]]).astype(jnp.float32)   # (2,)

    # Per-step live set ~ 2x double-buffered x block + 2x output block + xg +
    # ~30 row-sized temporaries + tiny weights.  Cap at 48 MiB so the request
    # stays below v7x's 64 MiB physical per-TC VMEM.
    block_bytes = C * HW * 4
    vmem_limit = int(min(48 * 1024 * 1024,
                         max(32 * 1024 * 1024, 6 * block_bytes + (4 << 20))))

    # Memory-bound kernel: on v7x a 'parallel' batch axis is sharded across the
    # two TensorCores, so tiny batches would leave each core a single,
    # un-pipelined step.  Keep the axis 'arbitrary' for small N (one core,
    # >=2 pipeline stages) and go 'parallel' once each core still sees >=3.
    semantics = ("parallel",) if N >= 6 else ("arbitrary",)

    kernel = functools.partial(_cbam_kernel, H=H, W=W)
    out3 = pl.pallas_call(
        kernel,
        out_shape=jax.ShapeDtypeStruct((N, C, HW), jnp.float32),
        grid=(N,),
        in_specs=[
            pl.BlockSpec((1, C, HW), lambda b: (b, 0, 0)),
            pl.BlockSpec((hid, C), lambda b: (0, 0)),
            pl.BlockSpec((hid, 1), lambda b: (0, 0)),
            pl.BlockSpec((C, hid), lambda b: (0, 0)),
            pl.BlockSpec((C, 1), lambda b: (0, 0)),
            pl.BlockSpec((7, 14), lambda b: (0, 0)),
            pl.BlockSpec(memory_space=pltpu.MemorySpace.SMEM),
        ],
        out_specs=pl.BlockSpec((1, C, HW), lambda b: (b, 0, 0)),
        compiler_params=pltpu.CompilerParams(
            dimension_semantics=semantics,
            vmem_limit_bytes=vmem_limit),
    )(x3, w1, b1, w2, b2, wmat, bn)
    # TODO(synk): for late-stage shapes with HW < 128, pack several batch
    # samples along the lane axis per block (with per-sample conv masks) to
    # keep vregs/stores full; bf16 I/O would further halve HBM traffic.
    return out3.reshape(N, C, H, W)


# ---------------- pure-JAX reference (for correctness check) -----------------
def cbam_reference(x, params):
    eps = 1e-5
    hp = lax.Precision.HIGHEST
    W1, b1, W2, b2 = params["w1"], params["b1"], params["w2"], params["b2"]

    def mlp(p):                                    # (N, C)
        h = jax.nn.relu(jnp.dot(p, W1.T, precision=hp) + b1)
        return jnp.dot(h, W2.T, precision=hp) + b2

    avg = x.mean(axis=(2, 3))
    mx = x.max(axis=(2, 3))
    att = jax.nn.sigmoid(mlp(avg) + mlp(mx))       # (N, C)
    xg = x * att[:, :, None, None]
    cpool = jnp.stack([xg.max(axis=1), xg.mean(axis=1)], axis=1)   # (N, 2, H, W)
    conv = lax.conv_general_dilated(
        cpool, params["conv_w"], window_strides=(1, 1),
        padding=[(3, 3), (3, 3)],
        dimension_numbers=("NCHW", "OIHW", "NCHW"),
        precision=hp)                                              # (N, 1, H, W)
    bn_scale = params["bn_gamma"] / jnp.sqrt(params["bn_var"] + eps)
    bn_shift = params["bn_beta"] - params["bn_mean"] * bn_scale
    y = conv * bn_scale[None, :, None, None] + bn_shift[None, :, None, None]
    return xg * jax.nn.sigmoid(y)


if __name__ == "__main__":
    N, C, H, W = 2, 32, 16, 16
    reduction_ratio = 16
    hid = C // reduction_ratio

    key = jax.random.PRNGKey(0)
    k1, k2, k3, k4, k5, kx = jax.random.split(key, 6)
    params = {
        "w1": jax.random.normal(k1, (hid, C), jnp.float32) * 0.1,
        "b1": jax.random.normal(k2, (hid,), jnp.float32) * 0.1,
        "w2": jax.random.normal(k3, (C, hid), jnp.float32) * 0.1,
        "b2": jax.random.normal(k4, (C,), jnp.float32) * 0.1,
        "conv_w": jax.random.normal(k5, (1, 2, 7, 7), jnp.float32) * 0.1,
        "bn_gamma": jnp.ones((1,), jnp.float32),
        "bn_beta": jnp.zeros((1,), jnp.float32),
        "bn_mean": jnp.zeros((1,), jnp.float32),
        "bn_var": jnp.ones((1,), jnp.float32),
    }
    x = jax.random.normal(kx, (N, C, H, W), jnp.float32)

    out = jax.block_until_ready(cbam_forward(x, params))
    ref = jax.block_until_ready(cbam_reference(x, params))

    # Tolerance sized for MXU f32 matmuls that may execute as bf16 passes with
    # f32 accumulation (generation/compiler dependent); structural errors
    # (wrong shift direction / weight layout) are O(0.1) and still caught.
    if not np.allclose(np.asarray(out), np.asarray(ref), rtol=2e-2, atol=2e-3):
        raise AssertionError("Pallas CBAM output does not match JAX reference")
    print("KERNEL_OK")
</pallas_src>

<mosaic_0001>
module attributes {stable_mosaic.version = 11 : i64} {
  func.func @_cbam_kernel(%arg0: i32, %arg1: memref<1x32x256xf32, #tpu.memory_space<vmem>>, %arg2: memref<2x32xf32, #tpu.memory_space<vmem>>, %arg3: memref<2x1xf32, #tpu.memory_space<vmem>>, %arg4: memref<32x2xf32, #tpu.memory_space<vmem>>, %arg5: memref<32x1xf32, #tpu.memory_space<vmem>>, %arg6: memref<7x14xf32, #tpu.memory_space<vmem>>, %arg7: memref<2xf32, #tpu.memory_space<smem>>, %arg8: memref<1x32x256xf32, #tpu.memory_space<vmem>>) attributes {dimension_semantics = [#tpu.dimension_semantics<arbitrary>], iteration_bounds = array<i64: 2>, scalar_prefetch = 0 : i64, scratch_operands = 0 : i64, tpu.core_type = #tpu.core_type<tc>, window_params = [{transform_indices = @transform_0, window_bounds = array<i64: 1, 32, 256>}, {pipeline_mode = #tpu.pipeline_mode<synchronous>, transform_indices = @transform_1, window_bounds = array<i64: 2, 32>}, {pipeline_mode = #tpu.pipeline_mode<synchronous>, transform_indices = @transform_2, window_bounds = array<i64: 2, 1>}, {pipeline_mode = #tpu.pipeline_mode<synchronous>, transform_indices = @transform_3, window_bounds = array<i64: 32, 2>}, {pipeline_mode = #tpu.pipeline_mode<synchronous>, transform_indices = @transform_4, window_bounds = array<i64: 32, 1>}, {pipeline_mode = #tpu.pipeline_mode<synchronous>, transform_indices = @transform_5, window_bounds = array<i64: 7, 14>}, {transform_indices = @transform_6, window_bounds = array<i64: 2>}, {transform_indices = @transform_7, window_bounds = array<i64: 1, 32, 256>}]} {
    %c0 = arith.constant 0 : index
    %c0_0 = arith.constant 0 : index
    %c0_1 = arith.constant 0 : index
    %0 = vector.load %arg1[%c0, %c0_0, %c0_1] : memref<1x32x256xf32, #tpu.memory_space<vmem>>, vector<1x32x256xf32>
    %1 = vector.shape_cast %0 : vector<1x32x256xf32> to vector<32x256xf32>
    %cst = arith.constant 1.000000e+00 : f32
    %2 = vector.broadcast %cst : f32 to vector<256x1xf32>
    %cst_2 = arith.constant dense<0.000000e+00> : vector<32x1xf32>
    %3 = tpu.matmul %1, %2, %cst_2 {dimension_numbers = #tpu.dot_dimension_numbers<[1], [0], [0], [1], [0, 0, 1, 1], [], []>} : vector<32x256xf32>, vector<256x1xf32>, vector<32x1xf32> -> vector<32x1xf32>
    %cst_3 = arith.constant 3.906250e-03 : f32
    %4 = vector.broadcast %cst_3 : f32 to vector<32x1xf32>
    %5 = arith.mulf %3, %4 : vector<32x1xf32>
    %cst_4 = arith.constant dense<0xFF800000> : vector<32xf32>
    %6 = vector.multi_reduction <maximumf>, %1, %cst_4 [1] : vector<32x256xf32> to vector<32xf32>
    %7 = vector.shape_cast %6 : vector<32xf32> to vector<32x1xf32>
    %8 = tpu.concatenate %5, %7 in 1 : vector<32x1xf32>, vector<32x1xf32> -> vector<32x2xf32>
    %c0_5 = arith.constant 0 : index
    %c0_6 = arith.constant 0 : index
    %9 = vector.load %arg2[%c0_5, %c0_6] : memref<2x32xf32, #tpu.memory_space<vmem>>, vector<2x32xf32>
    %cst_7 = arith.constant dense<0.000000e+00> : vector<2x2xf32>
    %10 = tpu.matmul %9, %8, %cst_7 {dimension_numbers = #tpu.dot_dimension_numbers<[1], [0], [0], [1], [0, 0, 1, 1], [], []>} : vector<2x32xf32>, vector<32x2xf32>, vector<2x2xf32> -> vector<2x2xf32>
    %c0_8 = arith.constant 0 : index
    %c0_9 = arith.constant 0 : index
    %11 = vector.load %arg3[%c0_8, %c0_9] : memref<2x1xf32, #tpu.memory_space<vmem>>, vector<2x1xf32>
    %12 = vector.broadcast %11 : vector<2x1xf32> to vector<2x2xf32>
    %13 = arith.addf %10, %12 : vector<2x2xf32>
    %cst_10 = arith.constant 0.000000e+00 : f32
    %14 = vector.broadcast %cst_10 : f32 to vector<2x2xf32>
    %15 = arith.maximumf %13, %14 : vector<2x2xf32>
    %c0_11 = arith.constant 0 : index
    %c0_12 = arith.constant 0 : index
    %16 = vector.load %arg4[%c0_11, %c0_12] : memref<32x2xf32, #tpu.memory_space<vmem>>, vector<32x2xf32>
    %cst_13 = arith.constant dense<0.000000e+00> : vector<32x2xf32>
    %17 = tpu.matmul %16, %15, %cst_13 {dimension_numbers = #tpu.dot_dimension_numbers<[1], [0], [0], [1], [0, 0, 1, 1], [], []>} : vector<32x2xf32>, vector<2x2xf32>, vector<32x2xf32> -> vector<32x2xf32>
    %c0_14 = arith.constant 0 : index
    %c0_15 = arith.constant 0 : index
    %18 = vector.load %arg5[%c0_14, %c0_15] : memref<32x1xf32, #tpu.memory_space<vmem>>, vector<32x1xf32>
    %19 = vector.broadcast %18 : vector<32x1xf32> to vector<32x2xf32>
    %20 = arith.addf %17, %19 : vector<32x2xf32>
    %cst_16 = arith.constant dense<0.000000e+00> : vector<32xf32>
    %21 = vector.multi_reduction <add>, %20, %cst_16 [1] : vector<32x2xf32> to vector<32xf32>
    %22 = vector.shape_cast %21 : vector<32xf32> to vector<32x1xf32>
    %23 = arith.negf %22 : vector<32x1xf32>
    %24 = math.exp %23 : vector<32x1xf32>
    %cst_17 = arith.constant 1.000000e+00 : f32
    %25 = vector.broadcast %cst_17 : f32 to vector<32x1xf32>
    %26 = arith.addf %25, %24 : vector<32x1xf32>
    %27 = arith.divf %25, %26 : vector<32x1xf32>
    %28 = vector.broadcast %27 : vector<32x1xf32> to vector<32x256xf32>
    %29 = arith.mulf %1, %28 : vector<32x256xf32>
    %cst_18 = arith.constant dense<0xFF800000> : vector<256xf32>
    %30 = vector.multi_reduction <maximumf>, %29, %cst_18 [0] : vector<32x256xf32> to vector<256xf32>
    %31 = vector.shape_cast %30 : vector<256xf32> to vector<1x256xf32>
    %cst_19 = arith.constant 1.000000e+00 : f32
    %32 = vector.broadcast %cst_19 : f32 to vector<1x32xf32>
    %cst_20 = arith.constant dense<0.000000e+00> : vector<1x256xf32>
    %33 = tpu.matmul %32, %29, %cst_20 {dimension_numbers = #tpu.dot_dimension_numbers<[1], [0], [0], [1], [0, 0, 1, 1], [], []>} : vector<1x32xf32>, vector<32x256xf32>, vector<1x256xf32> -> vector<1x256xf32>
    %cst_21 = arith.constant 3.125000e-02 : f32
    %34 = vector.broadcast %cst_21 : f32 to vector<1x256xf32>
    %35 = arith.mulf %33, %34 : vector<1x256xf32>
    %36 = tpu.concatenate %31, %35 in 0 : vector<1x256xf32>, vector<1x256xf32> -> vector<2x256xf32>
    %37 = tpu.iota {dimensions = array<i32: 1>} : vector<1x256xi32>
    %c16_i32 = arith.constant 16 : i32
    %c0_i32 = arith.constant 0 : i32
    %38 = arith.cmpi eq, %c16_i32, %c0_i32 : i32
    %c1_i32 = arith.constant 1 : i32
    %39 = arith.select %38, %c1_i32, %c16_i32 : i32
    %40 = vector.broadcast %39 : i32 to vector<1x256xi32>
    %41 = arith.remsi %37, %40 : vector<1x256xi32>
    %c0_i32_22 = arith.constant 0 : i32
    %42 = vector.broadcast %c0_i32_22 : i32 to vector<1x256xi32>
    %43 = arith.cmpi ne, %41, %42 : vector<1x256xi32>
    %c0_i32_23 = arith.constant 0 : i32
    %44 = vector.broadcast %c0_i32_23 : i32 to vector<1x256xi32>
    %45 = arith.cmpi slt, %41, %44 : vector<1x256xi32>
    %c0_i32_24 = arith.constant 0 : i32
    %46 = arith.cmpi slt, %39, %c0_i32_24 : i32
    %47 = vector.broadcast %46 : i1 to vector<1x256xi1>
    %48 = vector.broadcast %47 : vector<1x256xi1> to vector<1x256xi1>
    %49 = arith.xori %45, %48 : vector<1x256xi1>
    %50 = arith.andi %49, %43 : vector<1x256xi1>
    %51 = vector.broadcast %39 : i32 to vector<1x256xi32>
    %52 = arith.addi %41, %51 : vector<1x256xi32>
    %53 = arith.select %50, %52, %41 : vector<1x256xi1>, vector<1x256xi32>
    %c-3_i32 = arith.constant -3 : i32
    %54 = vector.broadcast %c-3_i32 : i32 to vector<1x256xi32>
    %55 = arith.addi %53, %54 : vector<1x256xi32>
    %c0_i32_25 = arith.constant 0 : i32
    %56 = vector.broadcast %c0_i32_25 : i32 to vector<1x256xi32>
    %57 = arith.cmpi sge, %55, %56 : vector<1x256xi32>
    %c-3_i32_26 = arith.constant -3 : i32
    %58 = vector.broadcast %c-3_i32_26 : i32 to vector<1x256xi32>
    %59 = arith.addi %53, %58 : vector<1x256xi32>
    %c16_i32_27 = arith.constant 16 : i32
    %60 = vector.broadcast %c16_i32_27 : i32 to vector<1x256xi32>
    %61 = arith.cmpi slt, %59, %60 : vector<1x256xi32>
    %62 = arith.andi %57, %61 : vector<1x256xi1>
    %63 = arith.extui %62 : vector<1x256xi1> to vector<1x256xi32>
    %64 = arith.sitofp %63 : vector<1x256xi32> to vector<1x256xf32>
    %cst_28 = arith.constant 0.000000e+00 : f32
    %65 = vector.broadcast %cst_28 : f32 to vector<2x3xf32>
    %66 = vector.extract_strided_slice %36 {offsets = [0, 0], sizes = [2, 253], strides = [1, 1]} : vector<2x256xf32> to vector<2x253xf32>
    %67 = tpu.concatenate %65, %66 in 1 : vector<2x3xf32>, vector<2x253xf32> -> vector<2x256xf32>
    %68 = vector.broadcast %64 : vector<1x256xf32> to vector<2x256xf32>
    %69 = arith.mulf %67, %68 : vector<2x256xf32>
    %c-2_i32 = arith.constant -2 : i32
    %70 = vector.broadcast %c-2_i32 : i32 to vector<1x256xi32>
    %71 = arith.addi %53, %70 : vector<1x256xi32>
    %c0_i32_29 = arith.constant 0 : i32
    %72 = vector.broadcast %c0_i32_29 : i32 to vector<1x256xi32>
    %73 = arith.cmpi sge, %71, %72 : vector<1x256xi32>
    %c-2_i32_30 = arith.constant -2 : i32
    %74 = vector.broadcast %c-2_i32_30 : i32 to vector<1x256xi32>
    %75 = arith.addi %53, %74 : vector<1x256xi32>
    %c16_i32_31 = arith.constant 16 : i32
    %76 = vector.broadcast %c16_i32_31 : i32 to vector<1x256xi32>
    %77 = arith.cmpi slt, %75, %76 : vector<1x256xi32>
    %78 = arith.andi %73, %77 : vector<1x256xi1>
    %79 = arith.extui %78 : vector<1x256xi1> to vector<1x256xi32>
    %80 = arith.sitofp %79 : vector<1x256xi32> to vector<1x256xf32>
    %cst_32 = arith.constant 0.000000e+00 : f32
    %81 = vector.broadcast %cst_32 : f32 to vector<2x2xf32>
    %82 = vector.extract_strided_slice %36 {offsets = [0, 0], sizes = [2, 254], strides = [1, 1]} : vector<2x256xf32> to vector<2x254xf32>
    %83 = tpu.concatenate %81, %82 in 1 : vector<2x2xf32>, vector<2x254xf32> -> vector<2x256xf32>
    %84 = vector.broadcast %80 : vector<1x256xf32> to vector<2x256xf32>
    %85 = arith.mulf %83, %84 : vector<2x256xf32>
    %c-1_i32 = arith.constant -1 : i32
    %86 = vector.broadcast %c-1_i32 : i32 to vector<1x256xi32>
    %87 = arith.addi %53, %86 : vector<1x256xi32>
    %c0_i32_33 = arith.constant 0 : i32
    %88 = vector.broadcast %c0_i32_33 : i32 to vector<1x256xi32>
    %89 = arith.cmpi sge, %87, %88 : vector<1x256xi32>
    %c-1_i32_34 = arith.constant -1 : i32
    %90 = vector.broadcast %c-1_i32_34 : i32 to vector<1x256xi32>
    %91 = arith.addi %53, %90 : vector<1x256xi32>
    %c16_i32_35 = arith.constant 16 : i32
    %92 = vector.broadcast %c16_i32_35 : i32 to vector<1x256xi32>
    %93 = arith.cmpi slt, %91, %92 : vector<1x256xi32>
    %94 = arith.andi %89, %93 : vector<1x256xi1>
    %95 = arith.extui %94 : vector<1x256xi1> to vector<1x256xi32>
    %96 = arith.sitofp %95 : vector<1x256xi32> to vector<1x256xf32>
    %cst_36 = arith.constant 0.000000e+00 : f32
    %97 = vector.broadcast %cst_36 : f32 to vector<2x1xf32>
    %98 = vector.extract_strided_slice %36 {offsets = [0, 0], sizes = [2, 255], strides = [1, 1]} : vector<2x256xf32> to vector<2x255xf32>
    %99 = tpu.concatenate %97, %98 in 1 : vector<2x1xf32>, vector<2x255xf32> -> vector<2x256xf32>
    %100 = vector.broadcast %96 : vector<1x256xf32> to vector<2x256xf32>
    %101 = arith.mulf %99, %100 : vector<2x256xf32>
    %c0_i32_37 = arith.constant 0 : i32
    %102 = vector.broadcast %c0_i32_37 : i32 to vector<1x256xi32>
    %103 = arith.addi %53, %102 : vector<1x256xi32>
    %c0_i32_38 = arith.constant 0 : i32
    %104 = vector.broadcast %c0_i32_38 : i32 to vector<1x256xi32>
    %105 = arith.cmpi sge, %103, %104 : vector<1x256xi32>
    %c0_i32_39 = arith.constant 0 : i32
    %106 = vector.broadcast %c0_i32_39 : i32 to vector<1x256xi32>
    %107 = arith.addi %53, %106 : vector<1x256xi32>
    %c16_i32_40 = arith.constant 16 : i32
    %108 = vector.broadcast %c16_i32_40 : i32 to vector<1x256xi32>
    %109 = arith.cmpi slt, %107, %108 : vector<1x256xi32>
    %110 = arith.andi %105, %109 : vector<1x256xi1>
    %111 = arith.extui %110 : vector<1x256xi1> to vector<1x256xi32>
    %112 = arith.sitofp %111 : vector<1x256xi32> to vector<1x256xf32>
    %113 = vector.broadcast %112 : vector<1x256xf32> to vector<2x256xf32>
    %114 = arith.mulf %36, %113 : vector<2x256xf32>
    %c1_i32_41 = arith.constant 1 : i32
    %115 = vector.broadcast %c1_i32_41 : i32 to vector<1x256xi32>
    %116 = arith.addi %53, %115 : vector<1x256xi32>
    %c0_i32_42 = arith.constant 0 : i32
    %117 = vector.broadcast %c0_i32_42 : i32 to vector<1x256xi32>
    %118 = arith.cmpi sge, %116, %117 : vector<1x256xi32>
    %c1_i32_43 = arith.constant 1 : i32
    %119 = vector.broadcast %c1_i32_43 : i32 to vector<1x256xi32>
    %120 = arith.addi %53, %119 : vector<1x256xi32>
    %c16_i32_44 = arith.constant 16 : i32
    %121 = vector.broadcast %c16_i32_44 : i32 to vector<1x256xi32>
    %122 = arith.cmpi slt, %120, %121 : vector<1x256xi32>
    %123 = arith.andi %118, %122 : vector<1x256xi1>
    %124 = arith.extui %123 : vector<1x256xi1> to vector<1x256xi32>
    %125 = arith.sitofp %124 : vector<1x256xi32> to vector<1x256xf32>
    %cst_45 = arith.constant 0.000000e+00 : f32
    %126 = vector.broadcast %cst_45 : f32 to vector<2x1xf32>
    %127 = vector.extract_strided_slice %36 {offsets = [0, 1], sizes = [2, 255], strides = [1, 1]} : vector<2x256xf32> to vector<2x255xf32>
    %128 = tpu.concatenate %127, %126 in 1 : vector<2x255xf32>, vector<2x1xf32> -> vector<2x256xf32>
    %129 = vector.broadcast %125 : vector<1x256xf32> to vector<2x256xf32>
    %130 = arith.mulf %128, %129 : vector<2x256xf32>
    %c2_i32 = arith.constant 2 : i32
    %131 = vector.broadcast %c2_i32 : i32 to vector<1x256xi32>
    %132 = arith.addi %53, %131 : vector<1x256xi32>
    %c0_i32_46 = arith.constant 0 : i32
    %133 = vector.broadcast %c0_i32_46 : i32 to vector<1x256xi32>
    %134 = arith.cmpi sge, %132, %133 : vector<1x256xi32>
    %c2_i32_47 = arith.constant 2 : i32
    %135 = vector.broadcast %c2_i32_47 : i32 to vector<1x256xi32>
    %136 = arith.addi %53, %135 : vector<1x256xi32>
    %c16_i32_48 = arith.constant 16 : i32
    %137 = vector.broadcast %c16_i32_48 : i32 to vector<1x256xi32>
    %138 = arith.cmpi slt, %136, %137 : vector<1x256xi32>
    %139 = arith.andi %134, %138 : vector<1x256xi1>
    %140 = arith.extui %139 : vector<1x256xi1> to vector<1x256xi32>
    %141 = arith.sitofp %140 : vector<1x256xi32> to vector<1x256xf32>
    %cst_49 = arith.constant 0.000000e+00 : f32
    %142 = vector.broadcast %cst_49 : f32 to vector<2x2xf32>
    %143 = vector.extract_strided_slice %36 {offsets = [0, 2], sizes = [2, 254], strides = [1, 1]} : vector<2x256xf32> to vector<2x254xf32>
    %144 = tpu.concatenate %143, %142 in 1 : vector<2x254xf32>, vector<2x2xf32> -> vector<2x256xf32>
    %145 = vector.broadcast %141 : vector<1x256xf32> to vector<2x256xf32>
    %146 = arith.mulf %144, %145 : vector<2x256xf32>
    %c3_i32 = arith.constant 3 : i32
    %147 = vector.broadcast %c3_i32 : i32 to vector<1x256xi32>
    %148 = arith.addi %53, %147 : vector<1x256xi32>
    %c0_i32_50 = arith.constant 0 : i32
    %149 = vector.broadcast %c0_i32_50 : i32 to vector<1x256xi32>
    %150 = arith.cmpi sge, %148, %149 : vector<1x256xi32>
    %c3_i32_51 = arith.constant 3 : i32
    %151 = vector.broadcast %c3_i32_51 : i32 to vector<1x256xi32>
    %152 = arith.addi %53, %151 : vector<1x256xi32>
    %c16_i32_52 = arith.constant 16 : i32
    %153 = vector.broadcast %c16_i32_52 : i32 to vector<1x256xi32>
    %154 = arith.cmpi slt, %152, %153 : vector<1x256xi32>
    %155 = arith.andi %150, %154 : vector<1x256xi1>
    %156 = arith.extui %155 : vector<1x256xi1> to vector<1x256xi32>
    %157 = arith.sitofp %156 : vector<1x256xi32> to vector<1x256xf32>
    %cst_53 = arith.constant 0.000000e+00 : f32
    %158 = vector.broadcast %cst_53 : f32 to vector<2x3xf32>
    %159 = vector.extract_strided_slice %36 {offsets = [0, 3], sizes = [2, 253], strides = [1, 1]} : vector<2x256xf32> to vector<2x253xf32>
    %160 = tpu.concatenate %159, %158 in 1 : vector<2x253xf32>, vector<2x3xf32> -> vector<2x256xf32>
    %161 = vector.broadcast %157 : vector<1x256xf32> to vector<2x256xf32>
    %162 = arith.mulf %160, %161 : vector<2x256xf32>
    %163 = tpu.concatenate %69, %85, %101, %114, %130, %146, %162 in 0 : vector<2x256xf32>, vector<2x256xf32>, vector<2x256xf32>, vector<2x256xf32>, vector<2x256xf32>, vector<2x256xf32>, vector<2x256xf32> -> vector<14x256xf32>
    %c0_54 = arith.constant 0 : index
    %c0_55 = arith.constant 0 : index
    %164 = vector.load %arg6[%c0_54, %c0_55] : memref<7x14xf32, #tpu.memory_space<vmem>>, vector<7x14xf32>
    %cst_56 = arith.constant dense<0.000000e+00> : vector<7x256xf32>
    %165 = tpu.matmul %164, %163, %cst_56 {dimension_numbers = #tpu.dot_dimension_numbers<[1], [0], [0], [1], [0, 0, 1, 1], [], []>} : vector<7x14xf32>, vector<14x256xf32>, vector<7x256xf32> -> vector<7x256xf32>
    %cst_57 = arith.constant 0.000000e+00 : f32
    %166 = vector.broadcast %cst_57 : f32 to vector<1x256xf32>
    %167 = vector.extract_strided_slice %165 {offsets = [0, 0], sizes = [1, 256], strides = [1, 1]} : vector<7x256xf32> to vector<1x256xf32>
    %cst_58 = arith.constant 0.000000e+00 : f32
    %168 = vector.broadcast %cst_58 : f32 to vector<1x48xf32>
    %169 = vector.extract_strided_slice %167 {offsets = [0, 0], sizes = [1, 208], strides = [1, 1]} : vector<1x256xf32> to vector<1x208xf32>
    %170 = tpu.concatenate %168, %169 in 1 : vector<1x48xf32>, vector<1x208xf32> -> vector<1x256xf32>
    %171 = arith.addf %166, %170 : vector<1x256xf32>
    %172 = vector.extract_strided_slice %165 {offsets = [1, 0], sizes = [1, 256], strides = [1, 1]} : vector<7x256xf32> to vector<1x256xf32>
    %cst_59 = arith.constant 0.000000e+00 : f32
    %173 = vector.broadcast %cst_59 : f32 to vector<1x32xf32>
    %174 = vector.extract_strided_slice %172 {offsets = [0, 0], sizes = [1, 224], strides = [1, 1]} : vector<1x256xf32> to vector<1x224xf32>
    %175 = tpu.concatenate %173, %174 in 1 : vector<1x32xf32>, vector<1x224xf32> -> vector<1x256xf32>
    %176 = arith.addf %171, %175 : vector<1x256xf32>
    %177 = vector.extract_strided_slice %165 {offsets = [2, 0], sizes = [1, 256], strides = [1, 1]} : vector<7x256xf32> to vector<1x256xf32>
    %cst_60 = arith.constant 0.000000e+00 : f32
    %178 = vector.broadcast %cst_60 : f32 to vector<1x16xf32>
    %179 = vector.extract_strided_slice %177 {offsets = [0, 0], sizes = [1, 240], strides = [1, 1]} : vector<1x256xf32> to vector<1x240xf32>
    %180 = tpu.concatenate %178, %179 in 1 : vector<1x16xf32>, vector<1x240xf32> -> vector<1x256xf32>
    %181 = arith.addf %176, %180 : vector<1x256xf32>
    %182 = vector.extract_strided_slice %165 {offsets = [3, 0], sizes = [1, 256], strides = [1, 1]} : vector<7x256xf32> to vector<1x256xf32>
    %183 = arith.addf %181, %182 : vector<1x256xf32>
    %184 = vector.extract_strided_slice %165 {offsets = [4, 0], sizes = [1, 256], strides = [1, 1]} : vector<7x256xf32> to vector<1x256xf32>
    %cst_61 = arith.constant 0.000000e+00 : f32
    %185 = vector.broadcast %cst_61 : f32 to vector<1x16xf32>
    %186 = vector.extract_strided_slice %184 {offsets = [0, 16], sizes = [1, 240], strides = [1, 1]} : vector<1x256xf32> to vector<1x240xf32>
    %187 = tpu.concatenate %186, %185 in 1 : vector<1x240xf32>, vector<1x16xf32> -> vector<1x256xf32>
    %188 = arith.addf %183, %187 : vector<1x256xf32>
    %189 = vector.extract_strided_slice %165 {offsets = [5, 0], sizes = [1, 256], strides = [1, 1]} : vector<7x256xf32> to vector<1x256xf32>
    %cst_62 = arith.constant 0.000000e+00 : f32
    %190 = vector.broadcast %cst_62 : f32 to vector<1x32xf32>
    %191 = vector.extract_strided_slice %189 {offsets = [0, 32], sizes = [1, 224], strides = [1, 1]} : vector<1x256xf32> to vector<1x224xf32>
    %192 = tpu.concatenate %191, %190 in 1 : vector<1x224xf32>, vector<1x32xf32> -> vector<1x256xf32>
    %193 = arith.addf %188, %192 : vector<1x256xf32>
    %194 = vector.extract_strided_slice %165 {offsets = [6, 0], sizes = [1, 256], strides = [1, 1]} : vector<7x256xf32> to vector<1x256xf32>
    %cst_63 = arith.constant 0.000000e+00 : f32
    %195 = vector.broadcast %cst_63 : f32 to vector<1x48xf32>
    %196 = vector.extract_strided_slice %194 {offsets = [0, 48], sizes = [1, 208], strides = [1, 1]} : vector<1x256xf32> to vector<1x208xf32>
    %197 = tpu.concatenate %196, %195 in 1 : vector<1x208xf32>, vector<1x48xf32> -> vector<1x256xf32>
    %198 = arith.addf %193, %197 : vector<1x256xf32>
    %c0_64 = arith.constant 0 : index
    %199 = memref.load %arg7[%c0_64] : memref<2xf32, #tpu.memory_space<smem>>
    %200 = vector.broadcast %199 : f32 to vector<1x256xf32>
    %201 = arith.mulf %198, %200 : vector<1x256xf32>
    %c1 = arith.constant 1 : index
    %202 = memref.load %arg7[%c1] : memref<2xf32, #tpu.memory_space<smem>>
    %203 = vector.broadcast %202 : f32 to vector<1x256xf32>
    %204 = arith.addf %201, %203 : vector<1x256xf32>
    %205 = arith.negf %204 : vector<1x256xf32>
    %206 = math.exp %205 : vector<1x256xf32>
    %cst_65 = arith.constant 1.000000e+00 : f32
    %207 = vector.broadcast %cst_65 : f32 to vector<1x256xf32>
    %208 = arith.addf %207, %206 : vector<1x256xf32>
    %209 = arith.divf %207, %208 : vector<1x256xf32>
    %210 = vector.broadcast %209 : vector<1x256xf32> to vector<32x256xf32>
    %211 = arith.mulf %29, %210 : vector<32x256xf32>
    %c0_66 = arith.constant 0 : index
    %c0_67 = arith.constant 0 : index
    %c0_68 = arith.constant 0 : index
    %212 = vector.load %arg8[%c0_66, %c0_67, %c0_68] : memref<1x32x256xf32, #tpu.memory_space<vmem>>, vector<1x32x256xf32>
    %213 = vector.shape_cast %212 : vector<1x32x256xf32> to vector<32x256xf32>
    %214 = vector.shape_cast %211 : vector<32x256xf32> to vector<1x32x256xf32>
    tpu.vector_store %arg8[%c0_66, %c0_67, %c0_68], %214 {strides = array<i32>} : memref<1x32x256xf32, #tpu.memory_space<vmem>>, vector<1x32x256xf32>,
    return
  }
  func.func @transform_0(%arg0: i32) -> (i32, i32, i32) {
    %c0_i32 = arith.constant 0 : i32
    %c0_i32_0 = arith.constant 0 : i32
    %c0_i32_1 = arith.constant 0 : i32
    return %arg0, %c0_i32, %c0_i32_0 : i32, i32, i32
  }
  func.func @transform_1(%arg0: i32) -> (i32, i32) {
    %c0_i32 = arith.constant 0 : i32
    %c0_i32_0 = arith.constant 0 : i32
    %c0_i32_1 = arith.constant 0 : i32
    return %c0_i32, %c0_i32_0 : i32, i32
  }
  func.func @transform_2(%arg0: i32) -> (i32, i32) {
    %c0_i32 = arith.constant 0 : i32
    %c0_i32_0 = arith.constant 0 : i32
    %c0_i32_1 = arith.constant 0 : i32
    return %c0_i32, %c0_i32_0 : i32, i32
  }
  func.func @transform_3(%arg0: i32) -> (i32, i32) {
    %c0_i32 = arith.constant 0 : i32
    %c0_i32_0 = arith.constant 0 : i32
    %c0_i32_1 = arith.constant 0 : i32
    return %c0_i32, %c0_i32_0 : i32, i32
  }
  func.func @transform_4(%arg0: i32) -> (i32, i32) {
    %c0_i32 = arith.constant 0 : i32
    %c0_i32_0 = arith.constant 0 : i32
    %c0_i32_1 = arith.constant 0 : i32
    return %c0_i32, %c0_i32_0 : i32, i32
  }
  func.func @transform_5(%arg0: i32) -> (i32, i32) {
    %c0_i32 = arith.constant 0 : i32
    %c0_i32_0 = arith.constant 0 : i32
    %c0_i32_1 = arith.constant 0 : i32
    return %c0_i32, %c0_i32_0 : i32, i32
  }
  func.func @transform_6(%arg0: i32) -> i32 {
    %c0_i32 = arith.constant 0 : i32
    %c0_i32_0 = arith.constant 0 : i32
    return %c0_i32 : i32
  }
  func.func @transform_7(%arg0: i32) -> (i32, i32, i32) {
    %c0_i32 = arith.constant 0 : i32
    %c0_i32_0 = arith.constant 0 : i32
    %c0_i32_1 = arith.constant 0 : i32
    return %arg0, %c0_i32, %c0_i32_0 : i32, i32, i32
  }
}

</mosaic_0001>

<llo_original>
// kernel: tpu_custom_call.1
$region0: #{tpu_custom_call.1}
  #allocation0 [shape = 'u32[]', space=smem, size = 0x4, offset = 0x4, fixed_abs, tag = 'smem constant byte address 0x4 - core index']
  #allocation1 [shape = 'u32[144,128]{1,0:T(1,128)}', space=vmem, size = 0x12000, scoped, tag = 'internal scratch']
  %s0 = inlined_call_operand.hbm [shape: f32[2,32,256], index: 0, kind: input, shape index: {}]
  %s1 = inlined_call_operand.vmem [shape: f32[2,32], index: 1, kind: input, shape index: {}]
  %s2 = inlined_call_operand.vmem [shape: f32[2,1], index: 2, kind: input, shape index: {}]
  %s3 = inlined_call_operand.vmem [shape: f32[32,2], index: 3, kind: input, shape index: {}]
  %s4 = inlined_call_operand.vmem [shape: f32[32,1], index: 4, kind: input, shape index: {}]
  %s5 = inlined_call_operand.vmem [shape: f32[7,14], index: 5, kind: input, shape index: {}]
  %s6 = inlined_call_operand.vmem [shape: f32[2], index: 6, kind: input, shape index: {}]
  %s7 = inlined_call_operand.hbm [shape: f32[2,32,256], index: 7, kind: output, shape index: {}]
  %s8 = sld [smem:[#allocation0]]
  $region69: #{tpu_custom_call.1} parent=0
    _
  %s10 = ssub.s32 1, %s8
  %s11 = scalar_select 0, %s10, %s8
  $region1: #{tpu_custom_call.1} parent=0
    #allocation2 [shape = 'u8[65536]{0}', space=vmem, size = 0x10000, scoped, tag = 'input window, operand 0']
    #allocation3 [shape = 's32[2]{0}', space=sflag, size = 0x8, scoped, tag = 'scoped memory for tpu_custom_call.1']
    #allocation4 [shape = 's32[2]{0}', space=sflag, size = 0x8, scoped, tag = 'scoped memory for tpu_custom_call.1']
    #allocation5 [shape = 's32[2]{0}', space=sflag, size = 0x8, scoped, tag = 'scoped memory for tpu_custom_call.1']
    #allocation6 [shape = 'u8[512]{0}', space=smem, size = 0x200, scoped, tag = 'input window, operand 6, single buffered']
    #allocation7 [shape = 'u8[65536]{0}', space=vmem, size = 0x10000, scoped, tag = 'output window, operand 0']
    %12 = vsyncpa [#allocation3], 0
    %s13 = scalar_lea.sflag [#allocation3], 1
    %14 = vsyncpa %s13, 0
    %15 = vsyncpa [#allocation5], 0
    %16 = vsyncpa [#allocation4], 0
    %s17 = scalar_lea.sflag [#allocation4], 1
    %18 = vsyncpa %s17, 0
    loop: start=0, step=1, limit=4
    $region2: #{tpu_custom_call.1} parent=1 // loop_pre_header
      _
    $region3: #{tpu_custom_call.1} parent=1 // loop_header
      %s20 = sphi 0, %s24
      %p21 = scmp.ge.s32.totalorder %s20, 4
      %s30 = sphi 0, %s32
      %s33 = sphi 0, %s30
      %s34 = sphi 0, %s33
      %s50 = sphi 0, %s34
      %s54 = sphi 0, %s54
      %s56 = sphi 0, %s54
      %s57 = sphi 0, %s56
      %s71 = sphi 0, %s57
      %s75 = sphi 0, %s75
      %s77 = sphi 0, %s75
      %s78 = sphi 0, %s77
      %s92 = sphi 0, %s78
      %s96 = sphi 0, %s96
      %s98 = sphi 0, %s96
      %s99 = sphi 0, %s98
      %s113 = sphi 0, %s99
      %s117 = sphi 0, %s117
      %s119 = sphi 0, %s117
      %s120 = sphi 0, %s119
      %s134 = sphi 0, %s120
      %s138 = sphi 0, %s138
      %s140 = sphi 0, %s138
      %s141 = sphi 0, %s140
      %s155 = sphi 0, %s141
      %s159 = sphi 0, %s159
      %s161 = sphi 0, %s159
      %s162 = sphi 0, %s161
      %s176 = sphi 0, %s162
      %s182 = sphi 0, %s184
      %s185 = sphi 0, %s182
      %s186 = sphi 0, %s185
      %s202 = sphi 0, %s186
    $region4: #{tpu_custom_call.1} parent=1 // loop_header_branch
      %23 = sbr.rel (%p21) target = $region8
    $region5: #{tpu_custom_call.1} parent=1 // loop_body
      %s25 = ssub.s32 %s20, 1
      %s26 = ssub.s32 %s20, 2
      %s27 = sadd.s32 %s20, 1
      %s28 = ssub.s32 %s20, %s27
      %p29 = scmp.eq.s32.totalorder %s28, 0
      %s31 = sadd.s32 %s30, 1
      %s32 = scalar_select %p29, %s30, %s31
      %p35 = pneg %p29
      %p36 = scmp.eq.s32.totalorder %s20, 1
      %p37 = por %p35, %p36
      %p38 = scmp.ne.s32.totalorder %s30, %s33
      %p39 = scmp.eq.s32.totalorder %s20, 0
      %p40 = por %p38, %p39
      %p41 = scmp.ne.s32.totalorder %s30, %s33
      %p42 = scmp.eq.s32.totalorder %s25, 1
      %p43 = por %p41, %p42
      %p44 = scmp.ne.s32.totalorder %s33, %s34
      %p45 = scmp.eq.s32.totalorder %s25, 0
      %p46 = por %p44, %p45
      %p47 = scmp.ne.s32.totalorder %s33, %s34
      %p48 = scmp.eq.s32.totalorder %s26, 1
      %p49 = por %p47, %p48
      %p51 = scmp.ne.s32.totalorder %s34, %s50
      %p52 = scmp.eq.s32.totalorder %s26, 0
      %p53 = por %p51, %p52
      %s55 = sadd.s32 %s54, 1
      %p58 = scmp.eq.s32.totalorder %s20, 1
      %p59 = scmp.ne.s32.totalorder %s54, %s56
      %p60 = scmp.eq.s32.totalorder %s20, 0
      %p61 = por %p59, %p60
      %p62 = scmp.ne.s32.totalorder %s54, %s56
      %p63 = scmp.eq.s32.totalorder %s25, 1
      %p64 = por %p62, %p63
      %p65 = scmp.ne.s32.totalorder %s56, %s57
      %p66 = scmp.eq.s32.totalorder %s25, 0
      %p67 = por %p65, %p66
      %p68 = scmp.ne.s32.totalorder %s56, %s57
      %p69 = scmp.eq.s32.totalorder %s26, 1
      %p70 = por %p68, %p69
      %p72 = scmp.ne.s32.totalorder %s57, %s71
      %p73 = scmp.eq.s32.totalorder %s26, 0
      %p74 = por %p72, %p73
      %s76 = sadd.s32 %s75, 1
      %p79 = scmp.eq.s32.totalorder %s20, 1
      %p80 = scmp.ne.s32.totalorder %s75, %s77
      %p81 = scmp.eq.s32.totalorder %s20, 0
      %p82 = por %p80, %p81
      %p83 = scmp.ne.s32.totalorder %s75, %s77
      %p84 = scmp.eq.s32.totalorder %s25, 1
      %p85 = por %p83, %p84
      %p86 = scmp.ne.s32.totalorder %s77, %s78
      %p87 = scmp.eq.s32.totalorder %s25, 0
      %p88 = por %p86, %p87
      %p89 = scmp.ne.s32.totalorder %s77, %s78
      %p90 = scmp.eq.s32.totalorder %s26, 1
      %p91 = por %p89, %p90
      %p93 = scmp.ne.s32.totalorder %s78, %s92
      %p94 = scmp.eq.s32.totalorder %s26, 0
      %p95 = por %p93, %p94
      %s97 = sadd.s32 %s96, 1
      %p100 = scmp.eq.s32.totalorder %s20, 1
      %p101 = scmp.ne.s32.totalorder %s96, %s98
      %p102 = scmp.eq.s32.totalorder %s20, 0
      %p103 = por %p101, %p102
      %p104 = scmp.ne.s32.totalorder %s96, %s98
      %p105 = scmp.eq.s32.totalorder %s25, 1
      %p106 = por %p104, %p105
      %p107 = scmp.ne.s32.totalorder %s98, %s99
      %p108 = scmp.eq.s32.totalorder %s25, 0
      %p109 = por %p107, %p108
      %p110 = scmp.ne.s32.totalorder %s98, %s99
      %p111 = scmp.eq.s32.totalorder %s26, 1
      %p112 = por %p110, %p111
      %p114 = scmp.ne.s32.totalorder %s99, %s113
      %p115 = scmp.eq.s32.totalorder %s26, 0
      %p116 = por %p114, %p115
      %s118 = sadd.s32 %s117, 1
      %p121 = scmp.eq.s32.totalorder %s20, 1
      %p122 = scmp.ne.s32.totalorder %s117, %s119
      %p123 = scmp.eq.s32.totalorder %s20, 0
      %p124 = por %p122, %p123
      %p125 = scmp.ne.s32.totalorder %s117, %s119
      %p126 = scmp.eq.s32.totalorder %s25, 1
      %p127 = por %p125, %p126
      %p128 = scmp.ne.s32.totalorder %s119, %s120
      %p129 = scmp.eq.s32.totalorder %s25, 0
      %p130 = por %p128, %p129
      %p131 = scmp.ne.s32.totalorder %s119, %s120
      %p132 = scmp.eq.s32.totalorder %s26, 1
      %p133 = por %p131, %p132
      %p135 = scmp.ne.s32.totalorder %s120, %s134
      %p136 = scmp.eq.s32.totalorder %s26, 0
      %p137 = por %p135, %p136
      %s139 = sadd.s32 %s138, 1
      %p142 = scmp.eq.s32.totalorder %s20, 1
      %p143 = scmp.ne.s32.totalorder %s138, %s140
      %p144 = scmp.eq.s32.totalorder %s20, 0
      %p145 = por %p143, %p144
      %p146 = scmp.ne.s32.totalorder %s138, %s140
      %p147 = scmp.eq.s32.totalorder %s25, 1
      %p148 = por %p146, %p147
      %p149 = scmp.ne.s32.totalorder %s140, %s141
      %p150 = scmp.eq.s32.totalorder %s25, 0
      %p151 = por %p149, %p150
      %p152 = scmp.ne.s32.totalorder %s140, %s141
      %p153 = scmp.eq.s32.totalorder %s26, 1
      %p154 = por %p152, %p153
      %p156 = scmp.ne.s32.totalorder %s141, %s155
      %p157 = scmp.eq.s32.totalorder %s26, 0
      %p158 = por %p156, %p157
      %s160 = sadd.s32 %s159, 1
      %p163 = scmp.eq.s32.totalorder %s20, 1
      %p164 = scmp.ne.s32.totalorder %s159, %s161
      %p165 = scmp.eq.s32.totalorder %s20, 0
      %p166 = por %p164, %p165
      %p167 = scmp.ne.s32.totalorder %s159, %s161
      %p168 = scmp.eq.s32.totalorder %s25, 1
      %p169 = por %p167, %p168
      %p170 = scmp.ne.s32.totalorder %s161, %s162
      %p171 = scmp.eq.s32.totalorder %s25, 0
      %p172 = por %p170, %p171
      %p173 = scmp.ne.s32.totalorder %s161, %s162
      %p174 = scmp.eq.s32.totalorder %s26, 1
      %p175 = por %p173, %p174
      %p177 = scmp.ne.s32.totalorder %s162, %s176
      %p178 = scmp.eq.s32.totalorder %s26, 0
      %p179 = por %p177, %p178
      %s180 = ssub.s32 %s20, %s27
      %p181 = scmp.eq.s32.totalorder %s180, 0
      %s183 = sadd.s32 %s182, 1
      %s184 = scalar_select %p181, %s182, %s183
      %p187 = pneg %p181
      %p188 = scmp.eq.s32.totalorder %s20, 1
      %p189 = por %p187, %p188
      %p190 = scmp.ne.s32.totalorder %s182, %s185
      %p191 = scmp.eq.s32.totalorder %s20, 0
      %p192 = por %p190, %p191
      %p193 = scmp.ne.s32.totalorder %s182, %s185
      %p194 = scmp.eq.s32.totalorder %s25, 1
      %p195 = por %p193, %p194
      %p196 = scmp.ne.s32.totalorder %s185, %s186
      %p197 = scmp.eq.s32.totalorder %s25, 0
      %p198 = por %p196, %p197
      %p199 = scmp.ne.s32.totalorder %s185, %s186
      %p200 = scmp.eq.s32.totalorder %s26, 1
      %p201 = por %p199, %p200
      %p203 = scmp.ne.s32.totalorder %s186, %s202
      %p204 = scmp.eq.s32.totalorder %s26, 0
      %p205 = por %p203, %p204
      %p206 = scmp.le.s32.totalorder 1, %s20
      %p207 = scmp.lt.s32.totalorder %s20, 3
      %p208 = pnand %p206, %p207
      %p209 = pneg %p208
      // Predicated region
      $region9: #{tpu_custom_call.1} parent=5 // pred_check
        _
      $region10: #{tpu_custom_call.1} parent=5 // pred_check_branch
        %211 = sbr.rel (%p208) target = $region12
      $region11: #{tpu_custom_call.1} parent=5 // pred_region
        %s212 = ssub.s32 %s20, 1
        // Predicated region
        $region13: #{tpu_custom_call.1} parent=11 // pred_check
          %p213 = pneg %p67
        $region14: #{tpu_custom_call.1} parent=11 // pred_check_branch
          %215 = sbr.rel (%p213) target = $region16
        $region15: #{tpu_custom_call.1} parent=11 // pred_region
          _
        $region16: #{tpu_custom_call.1} parent=11 // pred_fallthru
          _
        // Predicated region
        $region17: #{tpu_custom_call.1} parent=11 // pred_check
          %p216 = pneg %p88
        $region18: #{tpu_custom_call.1} parent=11 // pred_check_branch
          %218 = sbr.rel (%p216) target = $region20
        $region19: #{tpu_custom_call.1} parent=11 // pred_region
          _
        $region20: #{tpu_custom_call.1} parent=11 // pred_fallthru
          _
        // Predicated region
        $region21: #{tpu_custom_call.1} parent=11 // pred_check
          %p219 = pneg %p109
        $region22: #{tpu_custom_call.1} parent=11 // pred_check_branch
          %221 = sbr.rel (%p219) target = $region24
        $region23: #{tpu_custom_call.1} parent=11 // pred_region
          _
        $region24: #{tpu_custom_call.1} parent=11 // pred_fallthru
          _
        // Predicated region
        $region25: #{tpu_custom_call.1} parent=11 // pred_check
          %p222 = pneg %p130
        $region26: #{tpu_custom_call.1} parent=11 // pred_check_branch
          %224 = sbr.rel (%p222) target = $region28
        $region27: #{tpu_custom_call.1} parent=11 // pred_region
          _
        $region28: #{tpu_custom_call.1} parent=11 // pred_fallthru
          _
        // Predicated region
        $region29: #{tpu_custom_call.1} parent=11 // pred_check
          %p225 = pneg %p151
        $region30: #{tpu_custom_call.1} parent=11 // pred_check_branch
          %227 = sbr.rel (%p225) target = $region32
        $region31: #{tpu_custom_call.1} parent=11 // pred_region
          _
        $region32: #{tpu_custom_call.1} parent=11 // pred_fallthru
          _
        // Predicated region
        $region33: #{tpu_custom_call.1} parent=11 // pred_check
          %p228 = pneg %p172
        $region34: #{tpu_custom_call.1} parent=11 // pred_check_branch
          %230 = sbr.rel (%p228) target = $region36
        $region35: #{tpu_custom_call.1} parent=11 // pred_region
          %s232 = ssub.s32 16, 16
          %233 = vsyncadd [#allocation5], %s232
          %s235 = sshll.u32 %s6, 4
          %s236 = int_to_ptr.vmem [resolvable:$true] %s235
          %238 = dma.vmem_to_smem %s236, 16, [#allocation6], [#allocation5]
        $region36: #{tpu_custom_call.1} parent=11 // pred_fallthru
          _
      $region12: #{tpu_custom_call.1} parent=5 // pred_fallthru
        _
      %p239 = scmp.lt.s32.totalorder %s20, 2
      // Predicated region
      $region37: #{tpu_custom_call.1} parent=5 // pred_check
        %p240 = pneg %p239
      $region38: #{tpu_custom_call.1} parent=5 // pred_check_branch
        %242 = sbr.rel (%p240) target = $region40
      $region39: #{tpu_custom_call.1} parent=5 // pred_region
        // Predicated region
        $region41: #{tpu_custom_call.1} parent=39 // pred_check
          %p243 = pneg %p40
        $region42: #{tpu_custom_call.1} parent=39 // pred_check_branch
          %245 = sbr.rel (%p243) target = $region44
        $region43: #{tpu_custom_call.1} parent=39 // pred_region
          %s246 = sand.u32 %s30, 1
          %s247 = scalar_lea.sflag [#allocation3], %s246
          %s248 = sand.u32 %s30, 1
          %s249 = smul.addr %s248, 64
          %s250 = scalar_lea.vmem [#allocation2], %s249
          %s252 = ssub.s32 1024, 1024
          %253 = vsyncadd %s247, %s252
          %s254 = smul.addr %s20, 8
          %s255 = smul.addr %s254, 128
          %s256 = scalar_lea.hbm %s0, %s255
          %s257 = sshll.u32 %s250, 4
          %s258 = int_to_ptr.vmem [resolvable:$true] %s257
          %263 = dma.hbm_to_vmem [thread:$0]  %s256, 1024, %s258, %s247, 256, 256, 16
        $region44: #{tpu_custom_call.1} parent=39 // pred_fallthru
          _
      $region40: #{tpu_custom_call.1} parent=5 // pred_fallthru
        _
      %p264 = scmp.le.s32.totalorder 1, %s20
      %p265 = scmp.lt.s32.totalorder %s20, 3
      %p266 = pnand %p264, %p265
      %p267 = pneg %p266
      // Predicated region
      $region45: #{tpu_custom_call.1} parent=5 // pred_check
        _
      $region46: #{tpu_custom_call.1} parent=5 // pred_check_branch
        %269 = sbr.rel (%p266) target = $region48
      $region47: #{tpu_custom_call.1} parent=5 // pred_region
        %s270 = ssub.s32 %s20, 1
        %s271 = sand.u32 %s33, 1
        %s272 = scalar_lea.sflag [#allocation3], %s271
        %s273 = sand.u32 %s33, 1
        %s274 = smul.addr %s273, 64
        %s275 = scalar_lea.vmem [#allocation2], %s274
        // Predicated region
        $region49: #{tpu_custom_call.1} parent=47 // pred_check
          %p276 = pneg %p46
        $region50: #{tpu_custom_call.1} parent=47 // pred_check_branch
          %278 = sbr.rel (%p276) target = $region52
        $region51: #{tpu_custom_call.1} parent=47 // pred_region
          %279 = dma.done %s272, 1024
        $region52: #{tpu_custom_call.1} parent=47 // pred_fallthru
          _
        // Predicated region
        $region53: #{tpu_custom_call.1} parent=47 // pred_check
          %p280 = pneg %p172
        $region54: #{tpu_custom_call.1} parent=47 // pred_check_branch
          %282 = sbr.rel (%p280) target = $region56
        $region55: #{tpu_custom_call.1} parent=47 // pred_region
          %283 = dma.done [#allocation5], 16
        $region56: #{tpu_custom_call.1} parent=47 // pred_fallthru
          _
        %284 = sfence
        %s285 = sand.u32 %s33, 1
        %s286 = scalar_lea.sflag [#allocation3], %s285
        %s287 = sand.u32 %s33, 1
        %s288 = smul.addr %s287, 64
        %s289 = scalar_lea.vmem [#allocation2], %s288
        %p290 = pneg %p46
        %p291 = pneg %p43
        %p292 = pneg %p67
        %p293 = pneg %p64
        %p294 = pneg %p88
        %p295 = pneg %p85
        %p296 = pneg %p109
        %p297 = pneg %p106
        %p298 = pneg %p130
        %p299 = pneg %p127
        %p300 = pneg %p151
        %p301 = pneg %p148
        %p302 = pneg %p172
        %p303 = pneg %p169
        %p304 = pneg %p198
        %p305 = pneg %p195
        %s306 = sand.u32 %s185, 1
        %s307 = scalar_lea.sflag [#allocation4], %s306
        %s308 = sand.u32 %s185, 1
        %s309 = smul.addr %s308, 64
        %s310 = scalar_lea.vmem [#allocation7], %s309
        %v311 = vld [vmem:[%s275] sm:$0xff]
        %v312 = vld [vmem:[%s275 + $0x8] sm:$0xff]
        %v313 = vld [vmem:[%s275 + $0x10] sm:$0xff]
        %v314 = vld [vmem:[%s275 + $0x18] sm:$0xff]
        %v315 = vld [vmem:[%s275 + $0x20] sm:$0xff]
        %v316 = vld [vmem:[%s275 + $0x28] sm:$0xff]
        %v317 = vld [vmem:[%s275 + $0x30] sm:$0xff]
        %v318 = vld [vmem:[%s275 + $0x38] sm:$0xff]
        %319 = vmatprep.subr.mxu0 0.0
        %320 = vmatpush1.msra.mxu0 1.0
        %321 = vmatprep.subr.mxu0 0.0
        %322 = vmatpush1.msra.mxu0 1.0
        %323 = vmatprep.subr.mxu0 0.0
        %324 = vmatpush1.msra.mxu0 1.0
        %325 = vmatprep.subr.mxu0 0.0
        %326 = vmatpush1.msra.mxu0 1.0
        %327 = vmatprep.subr.mxu0 0.0
        %328 = vmatpush1.msra.mxu0 1.0
        %329 = vmatprep.subr.mxu0 0.0
        %330 = vmatpush1.msra.mxu0 1.0
        %331 = vmatprep.subr.mxu0 0.0
        %332 = vmatpush1.msra.mxu0 1.0
        %333 = vmatprep.subr.mxu0 0.0
        %334 = vmatpush1.msra.mxu0 1.0
        %335 = vmatprep.subr.mxu0 0.0
        %336 = vmatpush1.msra.mxu0 1.0
        %337 = vmatprep.subr.mxu0 0.0
        %338 = vmatpush1.msra.mxu0 1.0
        %339 = vmatprep.subr.mxu0 0.0
        %340 = vmatpush1.msra.mxu0 1.0
        %341 = vmatprep.subr.mxu0 0.0
        %342 = vmatpush1.msra.mxu0 1.0
        %343 = vmatprep.subr.mxu0 0.0
        %344 = vmatpush1.msra.mxu0 1.0
        %345 = vmatprep.subr.mxu0 0.0
        %346 = vmatpush1.msra.mxu0 1.0
        %347 = vmatprep.subr.mxu0 0.0
        %348 = vmatpush1.msra.mxu0 1.0
        %349 = vmatprep.subr.mxu0 0.0
        %350 = vmatpush1.msra.mxu0 1.0
        %351 = vmatprep.subr.mxu0 0.0
        %352 = vmatpush1.msra.mxu0 1.0
        %353 = vmatprep.subr.mxu0 0.0
        %354 = vmatpush1.msra.mxu0 1.0
        %355 = vmatprep.subr.mxu0 0.0
        %356 = vmatpush1.msra.mxu0 1.0
        %357 = vmatprep.subr.mxu0 0.0
        %358 = vmatpush1.msra.mxu0 1.0
        %359 = vmatprep.subr.mxu0 0.0
        %360 = vmatpush1.msra.mxu0 1.0
        %361 = vmatprep.subr.mxu0 0.0
        %362 = vmatpush1.msra.mxu0 1.0
        %363 = vmatprep.subr.mxu0 0.0
        %364 = vmatpush1.msra.mxu0 1.0
        %365 = vmatprep.subr.mxu0 0.0
        %366 = vmatpush1.msra.mxu0 1.0
        %367 = vmatprep.subr.mxu0 0.0
        %368 = vmatpush1.msra.mxu0 1.0
        %369 = vmatprep.subr.mxu0 0.0
        %370 = vmatpush1.msra.mxu0 1.0
        %371 = vmatprep.subr.mxu0 0.0
        %372 = vmatpush1.msra.mxu0 1.0
        %373 = vmatprep.subr.mxu0 0.0
        %374 = vmatpush1.msra.mxu0 1.0
        %375 = vmatprep.subr.mxu0 0.0
        %376 = vmatpush1.msra.mxu0 1.0
        %377 = vmatprep.subr.mxu0 0.0
        %378 = vmatpush1.msra.mxu0 1.0
        %379 = vmatprep.subr.mxu0 0.0
        %380 = vmatpush1.msra.mxu0 1.0
        %381 = vmatprep.subr.mxu0 0.0
        %382 = vmatpush1.msra.mxu0 1.0
        %383 = vmatprep.mubr.f32.mxu0 %v312
        %384 = vmatmul.mubr.f32.gmra.mrb[0].mxu0 %v311
        %v385 = vpop.f32.mrb[0].mxu0
        %v386 = vadd.f32 0.0, %v385
        %v387 = vpop.f32.mrb[0].mxu0
        %388 = vmatprep.mubr.f32.mxu0 %v314
        %389 = vmatmul.mubr.f32.gmra.mrb[0].mxu0 %v313
        %v390 = vpop.f32.mrb[0].mxu0
        %v391 = vadd.f32 0.0, %v390
        %v392 = vpop.f32.mrb[0].mxu0
        %393 = vmatprep.mubr.f32.mxu0 %v316
        %394 = vmatmul.mubr.f32.gmra.mrb[0].mxu0 %v315
        %v395 = vpop.f32.mrb[0].mxu0
        %v396 = vadd.f32 0.0, %v395
        %v397 = vpop.f32.mrb[0].mxu0
        %398 = vmatprep.mubr.f32.mxu0 %v318
        %399 = vmatmul.mubr.f32.gmra.mrb[0].mxu0 %v317
        %v400 = vpop.f32.mrb[0].mxu0
        %v401 = vadd.f32 0.0, %v400
        %v402 = vpop.f32.mrb[0].mxu0
        %403 = vdwg.mxu0
        %v404 = vmul.f32 %v386, 0.00390625
        %v405 = vmul.f32 %v391, 0.00390625
        %v406 = vmul.f32 %v396, 0.00390625
        %v407 = vmul.f32 %v401, 0.00390625
        %v408 = vmax.f32 %v311, %v312
        %409 = vmax.xlane.f32.xlu0 %v408
        %v410 = vpop.xlane.xlu0 %409
        %v411 = vmax.f32 %v313, %v314
        %412 = vmax.xlane.f32.xlu0 %v411
        %v413 = vpop.xlane.xlu0 %412
        %v414 = vmax.f32 %v315, %v316
        %415 = vmax.xlane.f32.xlu0 %v414
        %v416 = vpop.xlane.xlu0 %415
        %v417 = vmax.f32 %v317, %v318
        %418 = vmax.xlane.f32.xlu0 %v417
        %v419 = vpop.xlane.xlu0 %418
        %vm420 = vcmask 7168
        %v421 = vsel %vm420, %v404, %v410
        %v422 = vsel %vm420, %v405, %v413
        %v423 = vsel %vm420, %v406, %v416
        %v424 = vsel %vm420, %v407, %v419
        %v425 = vld [vmem:[%s1] sm:$0x3]
        %v426 = vld [vmem:[%s2] sm:$0x3]
        %428 = vset.pattern.permute.xlu0 0
        %429 = vperm.xlu0 %428, %v426
        %v430 = vpop.permute.xlu0 %429
        %vm432 = vcmask 261120
        %v434 = vsel %vm432, %v425, 0
        %436 = vmatprep.subr.mxu0 0.0
        %437 = vmatpush1.msra.mxu0 %v421
        %438 = vmatprep.subr.mxu0 0.0
        %439 = vmatpush1.msra.mxu0 %v422
        %440 = vmatprep.subr.mxu0 0.0
        %441 = vmatpush1.msra.mxu0 %v423
        %442 = vmatprep.subr.mxu0 0.0
        %443 = vmatpush1.msra.mxu0 %v424
        %444 = vmatprep.subr.mxu0 0.0
        %445 = vmatpush1.msra.mxu0 0.0
        %446 = vmatprep.subr.mxu0 0.0
        %447 = vmatpush1.msra.mxu0 0.0
        %448 = vmatprep.subr.mxu0 0.0
        %449 = vmatpush1.msra.mxu0 0.0
        %450 = vmatprep.subr.mxu0 0.0
        %451 = vmatpush1.msra.mxu0 0.0
        %452 = vmatprep.subr.mxu0 0.0
        %453 = vmatpush1.msra.mxu0 0.0
        %454 = vmatprep.subr.mxu0 0.0
        %455 = vmatpush1.msra.mxu0 0.0
        %456 = vmatprep.subr.mxu0 0.0
        %457 = vmatpush1.msra.mxu0 0.0
        %458 = vmatprep.subr.mxu0 0.0
        %459 = vmatpush1.msra.mxu0 0.0
        %460 = vmatprep.subr.mxu0 0.0
        %461 = vmatpush1.msra.mxu0 0.0
        %462 = vmatprep.subr.mxu0 0.0
        %463 = vmatpush1.msra.mxu0 0.0
        %464 = vmatprep.subr.mxu0 0.0
        %465 = vmatpush1.msra.mxu0 0.0
        %466 = vmatprep.subr.mxu0 0.0
        %467 = vmatpush1.msra.mxu0 0.0
        %468 = vmatprep.subr.mxu0 0.0
        %469 = vmatpush1.msra.mxu0 0.0
        %470 = vmatprep.subr.mxu0 0.0
        %471 = vmatpush1.msra.mxu0 0.0
        %472 = vmatprep.subr.mxu0 0.0
        %473 = vmatpush1.msra.mxu0 0.0
        %474 = vmatprep.subr.mxu0 0.0
        %475 = vmatpush1.msra.mxu0 0.0
        %476 = vmatprep.subr.mxu0 0.0
        %477 = vmatpush1.msra.mxu0 0.0
        %478 = vmatprep.subr.mxu0 0.0
        %479 = vmatpush1.msra.mxu0 0.0
        %480 = vmatprep.subr.mxu0 0.0
        %481 = vmatpush1.msra.mxu0 0.0
        %482 = vmatprep.subr.mxu0 0.0
        %483 = vmatpush1.msra.mxu0 0.0
        %484 = vmatprep.subr.mxu0 0.0
        %485 = vmatpush1.msra.mxu0 0.0
        %486 = vmatprep.subr.mxu0 0.0
        %487 = vmatpush1.msra.mxu0 0.0
        %488 = vmatprep.subr.mxu0 0.0
        %489 = vmatpush1.msra.mxu0 0.0
        %490 = vmatprep.subr.mxu0 0.0
        %491 = vmatpush1.msra.mxu0 0.0
        %492 = vmatprep.subr.mxu0 0.0
        %493 = vmatpush1.msra.mxu0 0.0
        %494 = vmatprep.subr.mxu0 0.0
        %495 = vmatpush1.msra.mxu0 0.0
        %496 = vmatprep.subr.mxu0 0.0
        %497 = vmatpush1.msra.mxu0 0.0
        %498 = vmatprep.subr.mxu0 0.0
        %499 = vmatpush1.msra.mxu0 0.0
        %500 = vmatprep.mubr.f32.mxu0 0.0
        %501 = vmatmul.mubr.f32.gmra.mrb[0].mxu0 %v434
        %v502 = vpop.f32.mrb[0].mxu0
        %v503 = vadd.f32 %v430, %v502
        %v504 = vpop.f32.mrb[0].mxu0
        %505 = vdwg.mxu0
        %v506 = vmax.f32 %v503, 0.0
        %v507 = vld [vmem:[%s3] sm:$0xff]
        %v508 = vld [vmem:[%s3 + $0x8] sm:$0xff]
        %v509 = vld [vmem:[%s3 + $0x10] sm:$0xff]
        %v510 = vld [vmem:[%s3 + $0x18] sm:$0xff]
        %v511 = vld [vmem:[%s4] sm:$0xff]
        %v512 = vld [vmem:[%s4 + $0x8] sm:$0xff]
        %v513 = vld [vmem:[%s4 + $0x10] sm:$0xff]
        %v514 = vld [vmem:[%s4 + $0x18] sm:$0xff]
        %516 = vset.pattern.permute.xlu0 0
        %517 = vperm.xlu0 %516, %v511
        %v518 = vpop.permute.xlu0 %517
        %521 = vset.pattern.permute.xlu0 0
        %522 = vperm.xlu0 %521, %v512
        %v523 = vpop.permute.xlu0 %522
        %526 = vset.pattern.permute.xlu0 0
        %527 = vperm.xlu0 %526, %v513
        %v528 = vpop.permute.xlu0 %527
        %531 = vset.pattern.permute.xlu0 0
        %532 = vperm.xlu0 %531, %v514
        %v533 = vpop.permute.xlu0 %532
        %vm535 = vcmask 15360
        %v537 = vsel %vm535, %v507, 0
        %v540 = vsel %vm535, %v508, 0
        %v543 = vsel %vm535, %v509, 0
        %v546 = vsel %vm535, %v510, 0
        %vm548 = vcmask 1041408
        %v550 = vsel %vm548, %v506, 0
        %552 = vmatprep.subr.mxu0 0.0
        %553 = vmatpush1.msra.mxu0 %v550
        %554 = vmatprep.subr.mxu0 0.0
        %555 = vmatpush1.msra.mxu0 0.0
        %556 = vmatprep.subr.mxu0 0.0
        %557 = vmatpush1.msra.mxu0 0.0
        %558 = vmatprep.subr.mxu0 0.0
        %559 = vmatpush1.msra.mxu0 0.0
        %560 = vmatprep.subr.mxu0 0.0
        %561 = vmatpush1.msra.mxu0 0.0
        %562 = vmatprep.subr.mxu0 0.0
        %563 = vmatpush1.msra.mxu0 0.0
        %564 = vmatprep.subr.mxu0 0.0
        %565 = vmatpush1.msra.mxu0 0.0
        %566 = vmatprep.subr.mxu0 0.0
        %567 = vmatpush1.msra.mxu0 0.0
        %568 = vmatprep.subr.mxu0 0.0
        %569 = vmatpush1.msra.mxu0 0.0
        %570 = vmatprep.subr.mxu0 0.0
        %571 = vmatpush1.msra.mxu0 0.0
        %572 = vmatprep.subr.mxu0 0.0
        %573 = vmatpush1.msra.mxu0 0.0
        %574 = vmatprep.subr.mxu0 0.0
        %575 = vmatpush1.msra.mxu0 0.0
        %576 = vmatprep.subr.mxu0 0.0
        %577 = vmatpush1.msra.mxu0 0.0
        %578 = vmatprep.subr.mxu0 0.0
        %579 = vmatpush1.msra.mxu0 0.0
        %580 = vmatprep.subr.mxu0 0.0
        %581 = vmatpush1.msra.mxu0 0.0
        %582 = vmatprep.subr.mxu0 0.0
        %583 = vmatpush1.msra.mxu0 0.0
        %584 = vmatprep.subr.mxu0 0.0
        %585 = vmatpush1.msra.mxu0 0.0
        %586 = vmatprep.subr.mxu0 0.0
        %587 = vmatpush1.msra.mxu0 0.0
        %588 = vmatprep.subr.mxu0 0.0
        %589 = vmatpush1.msra.mxu0 0.0
        %590 = vmatprep.subr.mxu0 0.0
        %591 = vmatpush1.msra.mxu0 0.0
        %592 = vmatprep.subr.mxu0 0.0
        %593 = vmatpush1.msra.mxu0 0.0
        %594 = vmatprep.subr.mxu0 0.0
        %595 = vmatpush1.msra.mxu0 0.0
        %596 = vmatprep.subr.mxu0 0.0
        %597 = vmatpush1.msra.mxu0 0.0
        %598 = vmatprep.subr.mxu0 0.0
        %599 = vmatpush1.msra.mxu0 0.0
        %600 = vmatprep.subr.mxu0 0.0
        %601 = vmatpush1.msra.mxu0 0.0
        %602 = vmatprep.subr.mxu0 0.0
        %603 = vmatpush1.msra.mxu0 0.0
        %604 = vmatprep.subr.mxu0 0.0
        %605 = vmatpush1.msra.mxu0 0.0
        %606 = vmatprep.subr.mxu0 0.0
        %607 = vmatpush1.msra.mxu0 0.0
        %608 = vmatprep.subr.mxu0 0.0
        %609 = vmatpush1.msra.mxu0 0.0
        %610 = vmatprep.subr.mxu0 0.0
        %611 = vmatpush1.msra.mxu0 0.0
        %612 = vmatprep.subr.mxu0 0.0
        %613 = vmatpush1.msra.mxu0 0.0
        %614 = vmatprep.subr.mxu0 0.0
        %615 = vmatpush1.msra.mxu0 0.0
        %616 = vmatprep.mubr.f32.mxu0 0.0
        %617 = vmatmul.mubr.f32.gmra.mrb[0].mxu0 %v537
        %v618 = vpop.f32.mrb[0].mxu0
        %v619 = vadd.f32 %v518, %v618
        %v620 = vpop.f32.mrb[0].mxu0
        %621 = vmatprep.mubr.f32.mxu0 0.0
        %622 = vmatmul.mubr.f32.gmra.mrb[0].mxu0 %v540
        %v623 = vpop.f32.mrb[0].mxu0
        %v624 = vadd.f32 %v523, %v623
        %v625 = vpop.f32.mrb[0].mxu0
        %626 = vmatprep.mubr.f32.mxu0 0.0
        %627 = vmatmul.mubr.f32.gmra.mrb[0].mxu0 %v543
        %v628 = vpop.f32.mrb[0].mxu0
        %v629 = vadd.f32 %v528, %v628
        %v630 = vpop.f32.mrb[0].mxu0
        %631 = vmatprep.mubr.f32.mxu0 0.0
        %632 = vmatmul.mubr.f32.gmra.mrb[0].mxu0 %v546
        %v633 = vpop.f32.mrb[0].mxu0
        %v634 = vadd.f32 %v533, %v633
        %v635 = vpop.f32.mrb[0].mxu0
        %636 = vdwg.mxu0
        %v637 = vsel %vm535, %v619, 0.0
        %638 = vadd.xlane.f32.xlu0 %v637
        %v639 = vpop.xlane.xlu0 %638
        %v640 = vsel %vm535, %v624, 0.0
        %641 = vadd.xlane.f32.xlu0 %v640
        %v642 = vpop.xlane.xlu0 %641
        %v643 = vsel %vm535, %v629, 0.0
        %644 = vadd.xlane.f32.xlu0 %v643
        %v645 = vpop.xlane.xlu0 %644
        %v646 = vsel %vm535, %v634, 0.0
        %647 = vadd.xlane.f32.xlu0 %v646
        %v648 = vpop.xlane.xlu0 %647
        %v649 = vxor.u32 %v639, 2147483648
        %v650 = vxor.u32 %v642, 2147483648
        %v651 = vxor.u32 %v645, 2147483648
        %v652 = vxor.u32 %v648, 2147483648
        %v653 = vmul.f32 %v649, 1.442695
        %v654 = vpow.pop %v653
        %v655 = vmul.f32 %v650, 1.442695
        %v656 = vpow.pop %v655
        %v657 = vmul.f32 %v651, 1.442695
        %v658 = vpow.pop %v657
        %v659 = vmul.f32 %v652, 1.442695
        %v660 = vpow.pop %v659
        %v661 = vadd.f32 %v654, 1.0
        %v662 = vadd.f32 %v656, 1.0
        %v663 = vadd.f32 %v658, 1.0
        %v664 = vadd.f32 %v660, 1.0
        %v665 = vrcp.pop %v661
        %v666 = vmul.f32 1.0, %v665
        %v667 = vrcp.pop %v662
        %v668 = vmul.f32 1.0, %v667
        %v669 = vrcp.pop %v663
        %v670 = vmul.f32 1.0, %v669
        %v671 = vrcp.pop %v664
        %v672 = vmul.f32 1.0, %v671
        %v673 = vmul.f32 %v311, %v666
        %v674 = vmul.f32 %v312, %v666
        %v675 = vmul.f32 %v313, %v668
        %v676 = vmul.f32 %v314, %v668
        %v677 = vmul.f32 %v315, %v670
        %v678 = vmul.f32 %v316, %v670
        %v679 = vmul.f32 %v317, %v672
        %v680 = vmul.f32 %v318, %v672
        %v681 = vmax.f32 %v673, %v677
        %v682 = vmax.f32 %v675, %v679
        %v683 = vmax.f32 %v681, %v682
        %v684 = vrot.slane %v683, 4
        %v685 = vmax.f32 %v683, %v684
        %v686 = vrot.slane %v685, 2
        %v687 = vmax.f32 %v685, %v686
        %v688 = vrot.slane %v687, 1
        %v689 = vmax.f32 %v687, %v688
        %v690 = vmax.f32 %v674, %v678
        %v691 = vmax.f32 %v676, %v680
        %v692 = vmax.f32 %v690, %v691
        %v693 = vrot.slane %v692, 4
        %v694 = vmax.f32 %v692, %v693
        %v695 = vrot.slane %v694, 2
        %v696 = vmax.f32 %v694, %v695
        %v697 = vrot.slane %v696, 1
        %v698 = vmax.f32 %v696, %v697
        %v700 = vsel %vm432, 1.0, 0
        %702 = vmatprep.subr.mxu0 %v674
        %703 = vmatpush1.msra.mxu0 %v673
        %704 = vmatprep.subr.mxu0 %v676
        %705 = vmatpush1.msra.mxu0 %v675
        %706 = vmatprep.subr.mxu0 %v678
        %707 = vmatpush1.msra.mxu0 %v677
        %708 = vmatprep.subr.mxu0 %v680
        %709 = vmatpush1.msra.mxu0 %v679
        %710 = vmatprep.subr.mxu0 0.0
        %711 = vmatpush1.msra.mxu0 0.0
        %712 = vmatprep.subr.mxu0 0.0
        %713 = vmatpush1.msra.mxu0 0.0
        %714 = vmatprep.subr.mxu0 0.0
        %715 = vmatpush1.msra.mxu0 0.0
        %716 = vmatprep.subr.mxu0 0.0
        %717 = vmatpush1.msra.mxu0 0.0
        %718 = vmatprep.subr.mxu0 0.0
        %719 = vmatpush1.msra.mxu0 0.0
        %720 = vmatprep.subr.mxu0 0.0
        %721 = vmatpush1.msra.mxu0 0.0
        %722 = vmatprep.subr.mxu0 0.0
        %723 = vmatpush1.msra.mxu0 0.0
        %724 = vmatprep.subr.mxu0 0.0
        %725 = vmatpush1.msra.mxu0 0.0
        %726 = vmatprep.subr.mxu0 0.0
        %727 = vmatpush1.msra.mxu0 0.0
        %728 = vmatprep.subr.mxu0 0.0
        %729 = vmatpush1.msra.mxu0 0.0
        %730 = vmatprep.subr.mxu0 0.0
        %731 = vmatpush1.msra.mxu0 0.0
        %732 = vmatprep.subr.mxu0 0.0
        %733 = vmatpush1.msra.mxu0 0.0
        %734 = vmatprep.subr.mxu0 0.0
        %735 = vmatpush1.msra.mxu0 0.0
        %736 = vmatprep.subr.mxu0 0.0
        %737 = vmatpush1.msra.mxu0 0.0
        %738 = vmatprep.subr.mxu0 0.0
        %739 = vmatpush1.msra.mxu0 0.0
        %740 = vmatprep.subr.mxu0 0.0
        %741 = vmatpush1.msra.mxu0 0.0
        %742 = vmatprep.subr.mxu0 0.0
        %743 = vmatpush1.msra.mxu0 0.0
        %744 = vmatprep.subr.mxu0 0.0
        %745 = vmatpush1.msra.mxu0 0.0
        %746 = vmatprep.subr.mxu0 0.0
        %747 = vmatpush1.msra.mxu0 0.0
        %748 = vmatprep.subr.mxu0 0.0
        %749 = vmatpush1.msra.mxu0 0.0
        %750 = vmatprep.subr.mxu0 0.0
        %751 = vmatpush1.msra.mxu0 0.0
        %752 = vmatprep.subr.mxu0 0.0
        %753 = vmatpush1.msra.mxu0 0.0
        %754 = vmatprep.subr.mxu0 0.0
        %755 = vmatpush1.msra.mxu0 0.0
        %756 = vmatprep.subr.mxu0 0.0
        %757 = vmatpush1.msra.mxu0 0.0
        %758 = vmatprep.subr.mxu0 0.0
        %759 = vmatpush1.msra.mxu0 0.0
        %760 = vmatprep.subr.mxu0 0.0
        %761 = vmatpush1.msra.mxu0 0.0
        %762 = vmatprep.subr.mxu0 0.0
        %763 = vmatpush1.msra.mxu0 0.0
        %764 = vmatprep.subr.mxu0 0.0
        %765 = vmatpush1.msra.mxu0 0.0
        %766 = vmatprep.mubr.f32.mxu0 0.0
        %767 = vmatmul.mubr.f32.gmra.mrb[0].mxu0 %v700
        %v768 = vpop.f32.mrb[0].mxu0
        %v769 = vadd.f32 0.0, %v768
        %v770 = vpop.f32.mrb[0].mxu0
        %v771 = vadd.f32 0.0, %v770
        %772 = vdwg.mxu0
        %v773 = vmul.f32 %v769, 0.03125
        %v774 = vmul.f32 %v771, 0.03125
        %v777 = vrot.slane %v773, 7
        %v778 = vrot.slane %v774, 7
        %vm781 = vcmask 1040384
        %v782 = vsel %vm781, %v689, %v777
        %v783 = vsel %vm781, %v698, %v778
        %v784 = vlaneseq
        %v785 = vand.u32 %v784, 127
        %v786 = vadd.s32 %v785, 128
        %vm787 = vcmp.lt.s32.totalorder %v785, 0
        %v788 = vsub.s32 0, %v785
        %v789 = vsel %vm787, %v788, %v785
        %v790 = vshrl.u32 %v789, 4
        %v791 = vand.u32 %v789, 15
        %v792 = vsub.s32 0, %v791
        %v793 = vsel %vm787, %v792, %v791
        %vm794 = vcmp.lt.s32.totalorder %v786, 0
        %v795 = vsub.s32 0, %v786
        %v796 = vsel %vm794, %v795, %v786
        %v797 = vshrl.u32 %v796, 4
        %v798 = vand.u32 %v796, 15
        %v799 = vsub.s32 0, %v798
        %v800 = vsel %vm794, %v799, %v798
        %vm801 = vcmp.ne.s32.totalorder %v793, 0
        %vm802 = vcmp.ne.s32.totalorder %v800, 0
        %vm803 = vcmp.lt.s32.totalorder %v793, 0
        %vm804 = vcmp.lt.s32.totalorder %v800, 0
        %vm805 = vmand %vm803, %vm801
        %vm806 = vmand %vm804, %vm802
        %v807 = vadd.s32 %v793, 16
        %v808 = vadd.s32 %v800, 16
        %v809 = vsel %vm805, %v807, %v793
        %v810 = vsel %vm806, %v808, %v800
        %v811 = vadd.s32 %v809, 4294967293
        %v812 = vadd.s32 %v810, 4294967293
        %vm813 = vcmp.ge.s32.totalorder %v811, 0
        %vm814 = vcmp.ge.s32.totalorder %v812, 0
        %vm815 = vcmp.lt.s32.totalorder %v811, 16
        %vm816 = vcmp.lt.s32.totalorder %v812, 16
        %vm817 = vmand %vm813, %vm815
        %vm818 = vmand %vm814, %vm816
        %v819 = vsel %vm817, 1, 0
        %v820 = vsel %vm818, 1, 0
        %v821 = vcvt.s32.f32 %v819
        %v822 = vcvt.s32.f32 %v820
        %825 = vrot.lane.b32.xlu0 %v782, 3
        %v826 = vpop.permute.xlu0 %825
        %827 = vrot.lane.b32.xlu0 %v783, 3
        %v828 = vpop.permute.xlu0 %827
        %vm829 = vcmask 23552
        %v830 = vsel %vm829, %v826, %v828
        %v833 = vsel %vm829, 0.0, %v826
        %v834 = vmul.f32 %v833, %v821
        %v835 = vmul.f32 %v830, %v822
        %v836 = vadd.s32 %v809, 4294967294
        %v837 = vadd.s32 %v810, 4294967294
        %vm838 = vcmp.ge.s32.totalorder %v836, 0
        %vm839 = vcmp.ge.s32.totalorder %v837, 0
        %vm840 = vcmp.lt.s32.totalorder %v836, 16
        %vm841 = vcmp.lt.s32.totalorder %v837, 16
        %vm842 = vmand %vm838, %vm840
        %vm843 = vmand %vm839, %vm841
        %v844 = vsel %vm842, 1, 0
        %v845 = vsel %vm843, 1, 0
        %v846 = vcvt.s32.f32 %v844
        %v847 = vcvt.s32.f32 %v845
        %848 = vrot.lane.b32.xlu0 %v782, 2
        %v849 = vpop.permute.xlu0 %848
        %850 = vrot.lane.b32.xlu0 %v783, 2
        %v851 = vpop.permute.xlu0 %850
        %v852 = vsel %vm535, %v849, %v851
        %v855 = vsel %vm535, 0.0, %v849
        %v856 = vmul.f32 %v855, %v846
        %v857 = vmul.f32 %v852, %v847
        %v858 = vadd.s32 %v809, 4294967295
        %v859 = vadd.s32 %v810, 4294967295
        %vm860 = vcmp.ge.s32.totalorder %v858, 0
        %vm861 = vcmp.ge.s32.totalorder %v859, 0
        %vm862 = vcmp.lt.s32.totalorder %v858, 16
        %vm863 = vcmp.lt.s32.totalorder %v859, 16
        %vm864 = vmand %vm860, %vm862
        %vm865 = vmand %vm861, %vm863
        %v866 = vsel %vm864, 1, 0
        %v867 = vsel %vm865, 1, 0
        %v868 = vcvt.s32.f32 %v866
        %v869 = vcvt.s32.f32 %v867
        %870 = vrot.lane.b32.xlu0 %v782, 1
        %v871 = vpop.permute.xlu0 %870
        %872 = vrot.lane.b32.xlu0 %v783, 1
        %v873 = vpop.permute.xlu0 %872
        %v874 = vsel %vm420, %v871, %v873
        %v877 = vsel %vm420, 0.0, %v871
        %v878 = vmul.f32 %v877, %v868
        %v879 = vmul.f32 %v874, %v869
        %vm880 = vcmp.ge.s32.totalorder %v809, 0
        %vm881 = vcmp.ge.s32.totalorder %v810, 0
        %vm882 = vcmp.lt.s32.totalorder %v809, 16
        %vm883 = vcmp.lt.s32.totalorder %v810, 16
        %vm884 = vmand %vm880, %vm882
        %vm885 = vmand %vm881, %vm883
        %v886 = vsel %vm884, 1, 0
        %v887 = vsel %vm885, 1, 0
        %v888 = vcvt.s32.f32 %v886
        %v889 = vcvt.s32.f32 %v887
        %v890 = vmul.f32 %v782, %v888
        %v891 = vmul.f32 %v783, %v889
        %v892 = vadd.s32 %v809, 1
        %v893 = vadd.s32 %v810, 1
        %vm894 = vcmp.ge.s32.totalorder %v892, 0
        %vm895 = vcmp.ge.s32.totalorder %v893, 0
        %vm896 = vcmp.lt.s32.totalorder %v892, 16
        %vm897 = vcmp.lt.s32.totalorder %v893, 16
        %vm898 = vmand %vm894, %vm896
        %vm899 = vmand %vm895, %vm897
        %v900 = vsel %vm898, 1, 0
        %v901 = vsel %vm899, 1, 0
        %v902 = vcvt.s32.f32 %v900
        %v903 = vcvt.s32.f32 %v901
        %904 = vrot.lane.b32.xlu0 %v782, 127
        %v905 = vpop.permute.xlu0 %904
        %906 = vrot.lane.b32.xlu0 %v783, 127
        %v907 = vpop.permute.xlu0 %906
        %vm908 = vcmask 1039360
        %v909 = vsel %vm908, %v905, %v907
        %v912 = vsel %vm908, %v907, 0.0
        %v913 = vmul.f32 %v909, %v902
        %v914 = vmul.f32 %v912, %v903
        %v915 = vadd.s32 %v809, 2
        %v916 = vadd.s32 %v810, 2
        %vm917 = vcmp.ge.s32.totalorder %v915, 0
        %vm918 = vcmp.ge.s32.totalorder %v916, 0
        %vm919 = vcmp.lt.s32.totalorder %v915, 16
        %vm920 = vcmp.lt.s32.totalorder %v916, 16
        %vm921 = vmand %vm917, %vm919
        %vm922 = vmand %vm918, %vm920
        %v923 = vsel %vm921, 1, 0
        %v924 = vsel %vm922, 1, 0
        %v925 = vcvt.s32.f32 %v923
        %v926 = vcvt.s32.f32 %v924
        %927 = vrot.lane.b32.xlu0 %v782, 126
        %v928 = vpop.permute.xlu0 %927
        %929 = vrot.lane.b32.xlu0 %v783, 126
        %v930 = vpop.permute.xlu0 %929
        %vm931 = vcmask 1031168
        %v932 = vsel %vm931, %v928, %v930
        %v935 = vsel %vm931, %v930, 0.0
        %v936 = vmul.f32 %v932, %v925
        %v937 = vmul.f32 %v935, %v926
        %v938 = vadd.s32 %v809, 3
        %v939 = vadd.s32 %v810, 3
        %vm940 = vcmp.ge.s32.totalorder %v938, 0
        %vm941 = vcmp.ge.s32.totalorder %v939, 0
        %vm942 = vcmp.lt.s32.totalorder %v938, 16
        %vm943 = vcmp.lt.s32.totalorder %v939, 16
        %vm944 = vmand %vm940, %vm942
        %vm945 = vmand %vm941, %vm943
        %v946 = vsel %vm944, 1, 0
        %v947 = vsel %vm945, 1, 0
        %v948 = vcvt.s32.f32 %v946
        %v949 = vcvt.s32.f32 %v947
        %950 = vrot.lane.b32.xlu0 %v782, 125
        %v951 = vpop.permute.xlu0 %950
        %952 = vrot.lane.b32.xlu0 %v783, 125
        %v953 = vpop.permute.xlu0 %952
        %vm954 = vcmask 1022976
        %v955 = vsel %vm954, %v951, %v953
        %v958 = vsel %vm954, %v953, 0.0
        %v959 = vmul.f32 %v955, %v948
        %v960 = vmul.f32 %v958, %v949
        %v963 = vrot.slane %v856, 6
        %v964 = vrot.slane %v857, 6
        %v969 = vrot.slane %v878, 4
        %v970 = vrot.slane %v879, 4
        %v975 = vrot.slane %v890, 2
        %v976 = vrot.slane %v891, 2
        %v981 = vrot.slane %v936, 6
        %v982 = vrot.slane %v937, 6
        %v987 = vrot.slane %v959, 4
        %v988 = vrot.slane %v960, 4
        %v991 = vsel %vm548, %v834, %v963
        %v992 = vsel %vm548, %v835, %v964
        %vm993 = vcmask 1043456
        %v994 = vsel %vm993, %v991, %v969
        %v995 = vsel %vm993, %v992, %v970
        %vm996 = vcmask 1045504
        %v997 = vsel %vm996, %v994, %v975
        %v998 = vsel %vm996, %v995, %v976
        %v999 = vsel %vm548, %v913, %v981
        %v1000 = vsel %vm548, %v914, %v982
        %v1001 = vsel %vm993, %v999, %v987
        %v1002 = vsel %vm993, %v1000, %v988
        %v1003 = vld [vmem:[%s5] sm:$0x7f]
        %vm1004 = vcmask 113664
        %v1006 = vsel %vm1004, %v1003, 0
        %v1009 = vsel %vm996, %v1001, 0
        %v1012 = vsel %vm996, %v1002, 0
        %1014 = vmatprep.subr.mxu0 %v998
        %1015 = vmatpush1.msra.mxu0 %v997
        %1016 = vmatprep.subr.mxu0 %v1012
        %1017 = vmatpush1.msra.mxu0 %v1009
        %1018 = vmatprep.subr.mxu0 0.0
        %1019 = vmatpush1.msra.mxu0 0.0
        %1020 = vmatprep.subr.mxu0 0.0
        %1021 = vmatpush1.msra.mxu0 0.0
        %1022 = vmatprep.subr.mxu0 0.0
        %1023 = vmatpush1.msra.mxu0 0.0
        %1024 = vmatprep.subr.mxu0 0.0
        %1025 = vmatpush1.msra.mxu0 0.0
        %1026 = vmatprep.subr.mxu0 0.0
        %1027 = vmatpush1.msra.mxu0 0.0
        %1028 = vmatprep.subr.mxu0 0.0
        %1029 = vmatpush1.msra.mxu0 0.0
        %1030 = vmatprep.subr.mxu0 0.0
        %1031 = vmatpush1.msra.mxu0 0.0
        %1032 = vmatprep.subr.mxu0 0.0
        %1033 = vmatpush1.msra.mxu0 0.0
        %1034 = vmatprep.subr.mxu0 0.0
        %1035 = vmatpush1.msra.mxu0 0.0
        %1036 = vmatprep.subr.mxu0 0.0
        %1037 = vmatpush1.msra.mxu0 0.0
        %1038 = vmatprep.subr.mxu0 0.0
        %1039 = vmatpush1.msra.mxu0 0.0
        %1040 = vmatprep.subr.mxu0 0.0
        %1041 = vmatpush1.msra.mxu0 0.0
        %1042 = vmatprep.subr.mxu0 0.0
        %1043 = vmatpush1.msra.mxu0 0.0
        %1044 = vmatprep.subr.mxu0 0.0
        %1045 = vmatpush1.msra.mxu0 0.0
        %1046 = vmatprep.subr.mxu0 0.0
        %1047 = vmatpush1.msra.mxu0 0.0
        %1048 = vmatprep.subr.mxu0 0.0
        %1049 = vmatpush1.msra.mxu0 0.0
        %1050 = vmatprep.subr.mxu0 0.0
        %1051 = vmatpush1.msra.mxu0 0.0
        %1052 = vmatprep.subr.mxu0 0.0
        %1053 = vmatpush1.msra.mxu0 0.0
        %1054 = vmatprep.subr.mxu0 0.0
        %1055 = vmatpush1.msra.mxu0 0.0
        %1056 = vmatprep.subr.mxu0 0.0
        %1057 = vmatpush1.msra.mxu0 0.0
        %1058 = vmatprep.subr.mxu0 0.0
        %1059 = vmatpush1.msra.mxu0 0.0
        %1060 = vmatprep.subr.mxu0 0.0
        %1061 = vmatpush1.msra.mxu0 0.0
        %1062 = vmatprep.subr.mxu0 0.0
        %1063 = vmatpush1.msra.mxu0 0.0
        %1064 = vmatprep.subr.mxu0 0.0
        %1065 = vmatpush1.msra.mxu0 0.0
        %1066 = vmatprep.subr.mxu0 0.0
        %1067 = vmatpush1.msra.mxu0 0.0
        %1068 = vmatprep.subr.mxu0 0.0
        %1069 = vmatpush1.msra.mxu0 0.0
        %1070 = vmatprep.subr.mxu0 0.0
        %1071 = vmatpush1.msra.mxu0 0.0
        %1072 = vmatprep.subr.mxu0 0.0
        %1073 = vmatpush1.msra.mxu0 0.0
        %1074 = vmatprep.subr.mxu0 0.0
        %1075 = vmatpush1.msra.mxu0 0.0
        %1076 = vmatprep.subr.mxu0 0.0
        %1077 = vmatpush1.msra.mxu0 0.0
        %1078 = vmatprep.mubr.f32.mxu0 0.0
        %1079 = vmatmul.mubr.f32.gmra.mrb[0].mxu0 %v1006
        %v1080 = vpop.f32.mrb[0].mxu0
        %v1081 = vadd.f32 0.0, %v1080
        %v1082 = vpop.f32.mrb[0].mxu0
        %v1083 = vadd.f32 0.0, %v1082
        %1084 = vdwg.mxu0
        %1087 = vrot.lane.b32.xlu0 %v1081, 48
        %v1088 = vpop.permute.xlu0 %1087
        %1089 = vrot.lane.b32.xlu0 %v1083, 48
        %v1090 = vpop.permute.xlu0 %1089
        %vm1091 = vcmask 392192
        %v1092 = vsel %vm1091, %v1088, %v1090
        %v1095 = vsel %vm1091, 0.0, %v1088
        %v1096 = vadd.f32 %v1095, 0.0
        %v1097 = vadd.f32 %v1092, 0.0
        %v1098 = vrot.slane %v1081, 1
        %v1099 = vrot.slane %v1083, 1
        %1100 = vrot.lane.b32.xlu0 %v1098, 32
        %v1101 = vpop.permute.xlu0 %1100
        %1102 = vrot.lane.b32.xlu0 %v1099, 32
        %v1103 = vpop.permute.xlu0 %1102
        %v1104 = vsel %vm432, %v1101, %v1103
        %v1107 = vsel %vm432, 0.0, %v1101
        %v1108 = vadd.f32 %v1096, %v1107
        %v1109 = vadd.f32 %v1097, %v1104
        %v1110 = vrot.slane %v1081, 2
        %v1111 = vrot.slane %v1083, 2
        %1112 = vrot.lane.b32.xlu0 %v1110, 16
        %v1113 = vpop.permute.xlu0 %1112
        %1114 = vrot.lane.b32.xlu0 %v1111, 16
        %v1115 = vpop.permute.xlu0 %1114
        %vm1116 = vcmask 130048
        %v1117 = vsel %vm1116, %v1113, %v1115
        %v1120 = vsel %vm1116, 0.0, %v1113
        %v1121 = vadd.f32 %v1108, %v1120
        %v1122 = vadd.f32 %v1109, %v1117
        %v1123 = vrot.slane %v1081, 3
        %v1124 = vrot.slane %v1083, 3
        %v1127 = vadd.f32 %v1121, %v1123
        %v1128 = vadd.f32 %v1122, %v1124
        %1129 = vrot.lane.b32.xlu0 %v1081, 112
        %v1130 = vpop.permute.xlu0 %1129
        %1131 = vrot.lane.b32.xlu0 %v1083, 112
        %v1132 = vpop.permute.xlu0 %1131
        %vm1133 = vcmask 916480
        %v1134 = vsel %vm1133, %v1130, %v1132
        %v1136 = vsel %vm1133, %v1132, 0.0
        %v1138 = vrot.slane %v1134, 4
        %v1139 = vrot.slane %v1136, 4
        %v1142 = vadd.f32 %v1127, %v1138
        %v1143 = vadd.f32 %v1128, %v1139
        %1144 = vrot.lane.b32.xlu0 %v1081, 96
        %v1145 = vpop.permute.xlu0 %1144
        %1146 = vrot.lane.b32.xlu0 %v1083, 96
        %v1147 = vpop.permute.xlu0 %1146
        %vm1148 = vcmask 785408
        %v1149 = vsel %vm1148, %v1145, %v1147
        %v1151 = vsel %vm1148, %v1147, 0.0
        %v1153 = vrot.slane %v1149, 5
        %v1154 = vrot.slane %v1151, 5
        %v1157 = vadd.f32 %v1142, %v1153
        %v1158 = vadd.f32 %v1143, %v1154
        %1159 = vrot.lane.b32.xlu0 %v1081, 80
        %v1160 = vpop.permute.xlu0 %1159
        %1161 = vrot.lane.b32.xlu0 %v1083, 80
        %v1162 = vpop.permute.xlu0 %1161
        %vm1163 = vcmask 654336
        %v1164 = vsel %vm1163, %v1160, %v1162
        %v1166 = vsel %vm1163, %v1162, 0.0
        %v1168 = vrot.slane %v1164, 6
        %v1169 = vrot.slane %v1166, 6
        %v1172 = vadd.f32 %v1157, %v1168
        %v1173 = vadd.f32 %v1158, %v1169
        %s1174 = sld [smem:[#allocation6]]
        %v1175 = vstv %s1174
        %v1176 = vmul.f32 %v1172, %v1175
        %v1177 = vmul.f32 %v1173, %v1175
        %s1178 = sld [smem:[#allocation6 + $0x1]]
        %v1179 = vstv %s1178
        %v1180 = vadd.f32 %v1176, %v1179
        %v1181 = vadd.f32 %v1177, %v1179
        %v1182 = vxor.u32 %v1180, 2147483648
        %v1183 = vxor.u32 %v1181, 2147483648
        %v1184 = vmul.f32 %v1182, 1.442695
        %v1185 = vpow.pop %v1184
        %v1186 = vmul.f32 %v1183, 1.442695
        %v1187 = vpow.pop %v1186
        %v1188 = vadd.f32 %v1185, 1.0
        %v1189 = vadd.f32 %v1187, 1.0
        %v1190 = vrcp.pop %v1188
        %v1191 = vmul.f32 1.0, %v1190
        %v1192 = vrcp.pop %v1189
        %v1193 = vmul.f32 1.0, %v1192
        %v1194 = vlaneseq
        %v1195 = vshrl.u32 %v1194, 7
        %v1196 = vsub.s32 0, %v1195
        %v1197 = vrot.slane %v1191, %v1196
        %v1198 = vlaneseq
        %v1199 = vshrl.u32 %v1198, 7
        %v1200 = vsub.s32 0, %v1199
        %v1201 = vrot.slane %v1193, %v1200
        %v1202 = vmul.f32 %v673, %v1197
        %v1203 = vmul.f32 %v674, %v1201
        %v1204 = vmul.f32 %v675, %v1197
        %v1205 = vmul.f32 %v676, %v1201
        %v1206 = vmul.f32 %v677, %v1197
        %v1207 = vmul.f32 %v678, %v1201
        %v1208 = vmul.f32 %v679, %v1197
        %v1209 = vmul.f32 %v680, %v1201
        %1210 = vst [vmem:[%s310] sm:$0xff] %v1202
        %1211 = vst [vmem:[%s310 + $0x8] sm:$0xff] %v1203
        %1212 = vst [vmem:[%s310 + $0x10] sm:$0xff] %v1204
        %1213 = vst [vmem:[%s310 + $0x18] sm:$0xff] %v1205
        %1214 = vst [vmem:[%s310 + $0x20] sm:$0xff] %v1206
        %1215 = vst [vmem:[%s310 + $0x28] sm:$0xff] %v1207
        %1216 = vst [vmem:[%s310 + $0x30] sm:$0xff] %v1208
        %1217 = vst [vmem:[%s310 + $0x38] sm:$0xff] %v1209
        %s1218 = sand.u32 %s185, 1
        %s1219 = scalar_lea.sflag [#allocation4], %s1218
        %s1220 = sand.u32 %s185, 1
        %s1221 = smul.addr %s1220, 64
        %s1222 = scalar_lea.vmem [#allocation7], %s1221
        // Predicated region
        $region57: #{tpu_custom_call.1} parent=47 // pred_check
          %p1223 = pneg %p195
        $region58: #{tpu_custom_call.1} parent=47 // pred_check_branch
          %1225 = sbr.rel (%p1223) target = $region60
        $region59: #{tpu_custom_call.1} parent=47 // pred_region
          %s1227 = ssub.s32 1024, 1024
          %1228 = vsyncadd %s1219, %s1227
          %s1229 = smul.addr %s25, 8
          %s1230 = smul.addr %s1229, 128
          %s1231 = scalar_lea.hbm %s7, %s1230
          %s1232 = sshll.u32 %s1222, 4
          %s1233 = int_to_ptr.vmem [resolvable:$true] %s1232
          %1238 = dma.vmem_to_hbm [thread:$0]  %s1233, 1024, %s1231, %s1219, 256, 256, 16
        $region60: #{tpu_custom_call.1} parent=47 // pred_fallthru
          _
      $region48: #{tpu_custom_call.1} parent=5 // pred_fallthru
        _
      %p1239 = scmp.le.s32.totalorder 2, %s20
      // Predicated region
      $region61: #{tpu_custom_call.1} parent=5 // pred_check
        %p1240 = pneg %p1239
      $region62: #{tpu_custom_call.1} parent=5 // pred_check_branch
        %1242 = sbr.rel (%p1240) target = $region64
      $region63: #{tpu_custom_call.1} parent=5 // pred_region
        %s1243 = ssub.s32 %s20, 2
        // Predicated region
        $region65: #{tpu_custom_call.1} parent=63 // pred_check
          %p1244 = pneg %p201
        $region66: #{tpu_custom_call.1} parent=63 // pred_check_branch
          %1246 = sbr.rel (%p1244) target = $region68
        $region67: #{tpu_custom_call.1} parent=63 // pred_region
          %s1247 = sand.u32 %s186, 1
          %s1248 = scalar_lea.sflag [#allocation4], %s1247
          %s1249 = sand.u32 %s186, 1
          %s1250 = smul.addr %s1249, 64
          %s1251 = scalar_lea.vmem [#allocation7], %s1250
          %1252 = dma.done %s1248, 1024
        $region68: #{tpu_custom_call.1} parent=63 // pred_fallthru
          _
      $region64: #{tpu_custom_call.1} parent=5 // pred_fallthru
        _
    $region6: #{tpu_custom_call.1} parent=1 // loop_footer
      %s24 = sadd.s32 1, %s20
    $region7: #{tpu_custom_call.1} parent=1 // loop_footer_branch
      %19 = sbr.rel target = $region3
    $region8: #{tpu_custom_call.1} parent=1 // loop_exit
      _
    %1253 = vsyncpa [#allocation3], 1
    %s1254 = scalar_lea.sflag [#allocation3], 1
    %1255 = vsyncpa %s1254, 1
    %1256 = vsyncpa [#allocation4], 1
    %s1257 = scalar_lea.sflag [#allocation4], 1
    %1258 = vsyncpa %s1257, 1
    %1259 = vsyncpa [#allocation5], 1
    %s1260 = scalar_lea.sflag [#allocation5], 1
    %1261 = vsyncpa %s1260, 1

</llo_original>
